<compile_context>
chip_gen: v6e
topology: v6e:2x2x1
jax: 0.10.0
libtpu: 0.0.40
codegen_flags: <defaults>
</compile_context>

<pallas_src>
import functools
import math

import jax
import jax.numpy as jnp
from jax import lax
from jax.experimental import pallas as pl
from jax.experimental.pallas import tpu as pltpu

_INV_SQRT2 = 1.0 / math.sqrt(2.0)
_LN_EPS = 1e-6
_DEFAULT_VMEM_LIMIT = 48 * 1024 * 1024


def _round_up(x, m):
    return ((x + m - 1) // m) * m


def _vmem_budget_bytes():
    """48 MiB on v5e/v6e (128 MiB physical); ~3/4 of physical on v7x (64 MiB)."""
    try:
        cap = int(pltpu.get_tpu_info().vmem_capacity_bytes)
        return int(min(_DEFAULT_VMEM_LIMIT, cap * 3 // 4))
    except Exception:
        return _DEFAULT_VMEM_LIMIT


def _layernorm_f32(x, g, b):
    mu = jnp.mean(x, axis=-1, keepdims=True)
    xc = x - mu
    var = jnp.mean(xc * xc, axis=-1, keepdims=True)
    return xc * lax.rsqrt(var + _LN_EPS) * g + b


# --------------------------------------------------------------------------
# Kernel 1: per-batch fused LN1 + QKV + multi-head attention + proj + residual
# TODO(synk): for long sequences replace the in-kernel attention with a
# K/V-tiled online-softmax (flash) loop; this assumes the per-head (S, S)
# score tile and the (S, 3D) qkv buffer fit in VMEM.
# --------------------------------------------------------------------------
def _attn_block_kernel(x_ref, g1_ref, b1_ref, wqkv_ref, bqkv_ref,
                       wproj_ref, bproj_ref, o_ref, *, n_heads, scale):
    x = x_ref[0].astype(jnp.float32)                       # (S, D)
    xn = _layernorm_f32(x, g1_ref[...], b1_ref[...])

    mxu_dtype = wqkv_ref.dtype                             # bf16 on the perf path
    exact = jnp.dtype(mxu_dtype) == jnp.dtype(jnp.float32)

    qkv = jnp.dot(xn.astype(mxu_dtype), wqkv_ref[...],
                  preferred_element_type=jnp.float32) + bqkv_ref[...]   # (S, 3D) f32
    D = wqkv_ref.shape[0]
    hd = D // n_heads

    # Head h of q / k / v is a contiguous column slice of qkv; computing per
    # head and concatenating reproduces torch's transpose(1,2).flatten(2)
    # layout with no relayout / HBM transpose.
    ctx_heads = []
    for h in range(n_heads):
        qh = qkv[:, h * hd:(h + 1) * hd].astype(mxu_dtype)
        kh = qkv[:, D + h * hd:D + (h + 1) * hd].astype(mxu_dtype)
        vh = qkv[:, 2 * D + h * hd:2 * D + (h + 1) * hd]
        # q @ k^T: contract the last dims of both (no explicit transpose).
        s = lax.dot_general(qh, kh, (((1,), (1,)), ((), ())),
                            preferred_element_type=jnp.float32) * scale
        m = jnp.max(s, axis=-1, keepdims=True)
        p = jnp.exp(s - m)
        denom = jnp.sum(p, axis=-1, keepdims=True)
        if exact:
            p = p / denom                                  # tight-accuracy path
        else:
            p = p * pl.reciprocal(denom, approx=True)      # EUP slot, VALU stays free
        ctx_heads.append(jnp.dot(p.astype(mxu_dtype), vh.astype(mxu_dtype),
                                 preferred_element_type=jnp.float32))
    ctx = jnp.concatenate(ctx_heads, axis=-1)              # (S, D)

    proj = jnp.dot(ctx.astype(mxu_dtype), wproj_ref[...],
                   preferred_element_type=jnp.float32) + bproj_ref[...]
    o_ref[0] = (x + proj).astype(o_ref.dtype)


# --------------------------------------------------------------------------
# Kernel 2: row-tiled fused LN2 + fc1 -> erf-GELU -> fc2 + residual
# --------------------------------------------------------------------------
def _mlp_block_kernel(x_ref, g2_ref, b2_ref, w1_ref, b1_ref, w2_ref, bo_ref,
                      o_ref, *, hidden_chunk):
    x = x_ref[...].astype(jnp.float32)                     # (TM, D)
    xn = _layernorm_f32(x, g2_ref[...], b2_ref[...])
    mxu_dtype = w1_ref.dtype
    lhs = xn.astype(mxu_dtype)
    hidden = w1_ref.shape[1]
    out_dim = w2_ref.shape[1]

    def _fc1_gelu_fc2(w1c, b1c, w2c):
        h = jnp.dot(lhs, w1c, preferred_element_type=jnp.float32) + b1c
        # exact erf GELU to match torch.nn.GELU() default
        h = 0.5 * h * (1.0 + lax.erf(h * _INV_SQRT2))
        return jnp.dot(h.astype(mxu_dtype), w2c, preferred_element_type=jnp.float32)

    if (hidden_chunk >= hidden or hidden % hidden_chunk != 0
            or hidden_chunk % 128 != 0):
        y = _fc1_gelu_fc2(w1_ref[...], b1_ref[...], w2_ref[...])
    else:
        # Chunk the hidden dim: caps the live (TM, hidden_chunk) intermediate.
        n_chunks = hidden // hidden_chunk

        def body(c, acc):
            off = pl.multiple_of(c * hidden_chunk, hidden_chunk)
            return acc + _fc1_gelu_fc2(w1_ref[:, pl.ds(off, hidden_chunk)],
                                       b1_ref[:, pl.ds(off, hidden_chunk)],
                                       w2_ref[pl.ds(off, hidden_chunk), :])

        y = lax.fori_loop(0, n_chunks, body,
                          jnp.zeros((x.shape[0], out_dim), jnp.float32))

    o_ref[...] = (x + y + bo_ref[...]).astype(o_ref.dtype)


# --------------------------------------------------------------------------
# Parameters
# --------------------------------------------------------------------------
def init_block_params(key, dim, n_heads, mlp_ratio=4.0):
    """PyTorch-layout parameters (Linear weight = (out, in)), all f32."""
    del n_heads
    hidden = int(dim * mlp_ratio)
    ks = jax.random.split(key, 12)

    def linear(kw, kb, fan_in, fan_out):
        bound = 1.0 / math.sqrt(fan_in)
        w = jax.random.uniform(kw, (fan_out, fan_in), minval=-bound,
                               maxval=bound, dtype=jnp.float32)
        b = jax.random.uniform(kb, (fan_out,), minval=-bound,
                               maxval=bound, dtype=jnp.float32)
        return w, b

    wqkv, bqkv = linear(ks[0], ks[1], dim, 3 * dim)
    wproj, bproj = linear(ks[2], ks[3], dim, dim)
    w1, b1 = linear(ks[4], ks[5], dim, hidden)
    w2, b2 = linear(ks[6], ks[7], hidden, dim)
    ln1_g = jax.random.uniform(ks[8], (dim,), minval=0.5, maxval=1.5, dtype=jnp.float32)
    ln1_b = jax.random.uniform(ks[9], (dim,), minval=-0.5, maxval=0.5, dtype=jnp.float32)
    ln2_g = jax.random.uniform(ks[10], (dim,), minval=0.5, maxval=1.5, dtype=jnp.float32)
    ln2_b = jax.random.uniform(ks[11], (dim,), minval=-0.5, maxval=0.5, dtype=jnp.float32)
    return dict(ln1_g=ln1_g, ln1_b=ln1_b, wqkv=wqkv, bqkv=bqkv,
                wproj=wproj, bproj=bproj, ln2_g=ln2_g, ln2_b=ln2_b,
                w1=w1, b1=b1, w2=w2, b2=b2)


def prepare_block_params(p, compute_dtype=jnp.bfloat16):
    """One-time prep OUTSIDE the hot path: transpose Linear weights to (in, out)
    and cast matmul operands to the MXU compute dtype (bf16 by default).
    Biases / LayerNorm affine stay f32."""
    cd = compute_dtype
    r = lambda a: a.reshape(1, -1).astype(jnp.float32)
    return dict(
        ln1_g=r(p["ln1_g"]), ln1_b=r(p["ln1_b"]),
        wqkv_t=jnp.asarray(p["wqkv"].T, dtype=cd), bqkv=r(p["bqkv"]),
        wproj_t=jnp.asarray(p["wproj"].T, dtype=cd), bproj=r(p["bproj"]),
        ln2_g=r(p["ln2_g"]), ln2_b=r(p["ln2_b"]),
        w1_t=jnp.asarray(p["w1"].T, dtype=cd), b1=r(p["b1"]),
        w2_t=jnp.asarray(p["w2"].T, dtype=cd), b2=r(p["b2"]),
    )


# --------------------------------------------------------------------------
# Block forward
# --------------------------------------------------------------------------
@functools.partial(jax.jit, static_argnames=("n_heads", "block_rows", "mlp_chunk"))
def block_forward(x, prep, *, n_heads, block_rows=512, mlp_chunk=1024):
    """x: (n_samples, n_patches+1, dim) -> same shape (eval-mode Block.forward)."""
    B, S, D = x.shape
    hd = D // n_heads
    hidden = prep["w1_t"].shape[1]
    M = B * S
    scale = float(hd) ** -0.5

    vmem_limit = _vmem_budget_bytes()
    cparams = pltpu.CompilerParams(
        dimension_semantics=("parallel",),
        vmem_limit_bytes=vmem_limit,
    )

    # ---- Kernel 1: per-batch fused attention half ------------------------
    x1 = pl.pallas_call(
        functools.partial(_attn_block_kernel, n_heads=n_heads, scale=scale),
        out_shape=jax.ShapeDtypeStruct((B, S, D), jnp.float32),
        grid=(B,),
        in_specs=[
            pl.BlockSpec((1, S, D), lambda b: (b, 0, 0)),       # x[b]
            pl.BlockSpec((1, D), lambda b: (0, 0)),             # ln1 gamma
            pl.BlockSpec((1, D), lambda b: (0, 0)),             # ln1 beta
            pl.BlockSpec((D, 3 * D), lambda b: (0, 0)),         # Wqkv (resident)
            pl.BlockSpec((1, 3 * D), lambda b: (0, 0)),         # bqkv
            pl.BlockSpec((D, D), lambda b: (0, 0)),             # Wproj (resident)
            pl.BlockSpec((1, D), lambda b: (0, 0)),             # bproj
        ],
        out_specs=pl.BlockSpec((1, S, D), lambda b: (b, 0, 0)),
        compiler_params=cparams,
    )(x, prep["ln1_g"], prep["ln1_b"], prep["wqkv_t"], prep["bqkv"],
      prep["wproj_t"], prep["bproj"])

    # ---- Kernel 2: row-tiled fused MLP half -------------------------------
    TM = _round_up(min(block_rows, _round_up(M, 8)), 8)       # multiple of 8
    if M <= TM and M >= 16:
        # >= 2 grid tiles so both v7x TensorCores get work (harmless on v5e/v6e)
        TM = _round_up(pl.cdiv(M, 2), 8)

    w_itemsize = jnp.dtype(prep["w1_t"].dtype).itemsize

    def _k2_vmem(tm):
        # double-buffered resident weights + double-buffered in/out tiles + live MLP intermediates
        weights = 2 * (D * hidden + hidden * D + 2 * D + hidden) * w_itemsize
        acts = 2 * 2 * tm * D * 4
        interm = 2 * tm * min(mlp_chunk, hidden) * 4 + tm * D * 4
        return weights + acts + interm

    while TM > 64 and _k2_vmem(TM) > vmem_limit:
        TM = _round_up(TM // 2, 8)

    n_tiles = pl.cdiv(M, TM)        # ragged tail -> partial block (no jnp.pad)
    x1_2d = x1.reshape(M, D)        # contiguous reshape: no HBM relayout

    out2d = pl.pallas_call(
        functools.partial(_mlp_block_kernel, hidden_chunk=mlp_chunk),
        out_shape=jax.ShapeDtypeStruct((M, D), x.dtype),
        grid=(n_tiles,),
        in_specs=[
            pl.BlockSpec((TM, D), lambda i: (i, 0)),            # x1 tile (LN in + residual)
            pl.BlockSpec((1, D), lambda i: (0, 0)),             # ln2 gamma
            pl.BlockSpec((1, D), lambda i: (0, 0)),             # ln2 beta
            pl.BlockSpec((D, hidden), lambda i: (0, 0)),        # W1 (resident)
            pl.BlockSpec((1, hidden), lambda i: (0, 0)),        # b1
            pl.BlockSpec((hidden, D), lambda i: (0, 0)),        # W2 (resident)
            pl.BlockSpec((1, D), lambda i: (0, 0)),             # b2
        ],
        out_specs=pl.BlockSpec((TM, D), lambda i: (i, 0)),
        compiler_params=cparams,
    )(x1_2d, prep["ln2_g"], prep["ln2_b"], prep["w1_t"], prep["b1"],
      prep["w2_t"], prep["b2"])

    return out2d.reshape(B, S, D)


# --------------------------------------------------------------------------
# Pure-JAX f32 reference (mirrors the PyTorch Block.forward in eval mode)
# --------------------------------------------------------------------------
def _reference_block(x, p, n_heads):
    B, S, D = x.shape
    hd = D // n_heads

    def ln(z, g, b):
        mu = z.mean(-1, keepdims=True)
        var = ((z - mu) ** 2).mean(-1, keepdims=True)
        return (z - mu) * lax.rsqrt(var + _LN_EPS) * g + b

    h = ln(x, p["ln1_g"], p["ln1_b"])
    qkv = jnp.einsum("bsd,ed->bse", h, p["wqkv"]) + p["bqkv"]
    qkv = qkv.reshape(B, S, 3, n_heads, hd).transpose(2, 0, 3, 1, 4)
    q, k, v = qkv[0], qkv[1], qkv[2]
    attn = jax.nn.softmax(
        jnp.einsum("bhqd,bhkd->bhqk", q, k) * (hd ** -0.5), axis=-1)
    ctx = jnp.einsum("bhqk,bhkd->bhqd", attn, v)
    ctx = ctx.transpose(0, 2, 1, 3).reshape(B, S, D)
    x = x + jnp.einsum("bsd,ed->bse", ctx, p["wproj"]) + p["bproj"]

    h = ln(x, p["ln2_g"], p["ln2_b"])
    h = jnp.einsum("bsd,hd->bsh", h, p["w1"]) + p["b1"]
    h = 0.5 * h * (1.0 + lax.erf(h * _INV_SQRT2))
    h = jnp.einsum("bsh,dh->bsd", h, p["w2"]) + p["b2"]
    return x + h


if __name__ == "__main__":
    # Small shapes consistent with Block.forward: (n_samples, n_patches+1, dim)
    B, S = 2, 9
    dim, n_heads, mlp_ratio = 64, 4, 4.0

    key = jax.random.PRNGKey(0)
    kx, kp = jax.random.split(key)
    x = jax.random.normal(kx, (B, S, dim), dtype=jnp.float32)
    params = init_block_params(kp, dim, n_heads, mlp_ratio)

    ref = _reference_block(x, params, n_heads)

    # f32 matmuls + exact softmax divide: tight tolerance.
    # Small block_rows / mlp_chunk exercise the multi-tile grid, the ragged
    # (partial) tail tile and the hidden-dim chunk loop.
    prep_f32 = prepare_block_params(params, compute_dtype=jnp.float32)
    out_f32 = jax.block_until_ready(
        block_forward(x, prep_f32, n_heads=n_heads, block_rows=8, mlp_chunk=128))
    assert out_f32.shape == (B, S, dim)
    assert bool(jnp.allclose(out_f32, ref, atol=2e-4, rtol=2e-4)), "f32 path mismatch"

    # bf16 MXU operands + f32 accumulation + approx-reciprocal softmax
    # (the perf-recommended path): looser tolerance.
    prep_bf16 = prepare_block_params(params, compute_dtype=jnp.bfloat16)
    out_bf16 = jax.block_until_ready(
        block_forward(x, prep_bf16, n_heads=n_heads))
    assert bool(jnp.allclose(out_bf16, ref, atol=1e-1, rtol=1e-1)), "bf16 path mismatch"

    print("KERNEL_OK")
</pallas_src>

<mosaic_0001>
module attributes {stable_mosaic.version = 11 : i64} {
  func.func @_attn_block_kernel(%arg0: i32, %arg1: memref<1x9x64xf32, #tpu.memory_space<vmem>>, %arg2: memref<1x64xf32, #tpu.memory_space<vmem>>, %arg3: memref<1x64xf32, #tpu.memory_space<vmem>>, %arg4: memref<64x192xf32, #tpu.memory_space<vmem>>, %arg5: memref<1x192xf32, #tpu.memory_space<vmem>>, %arg6: memref<64x64xf32, #tpu.memory_space<vmem>>, %arg7: memref<1x64xf32, #tpu.memory_space<vmem>>, %arg8: memref<1x9x64xf32, #tpu.memory_space<vmem>>) attributes {dimension_semantics = [#tpu.dimension_semantics<parallel>], iteration_bounds = array<i64: 2>, scalar_prefetch = 0 : i64, scratch_operands = 0 : i64, tpu.core_type = #tpu.core_type<tc>, window_params = [{transform_indices = @transform_0, window_bounds = array<i64: 1, 9, 64>}, {pipeline_mode = #tpu.pipeline_mode<synchronous>, transform_indices = @transform_1, window_bounds = array<i64: 1, 64>}, {pipeline_mode = #tpu.pipeline_mode<synchronous>, transform_indices = @transform_2, window_bounds = array<i64: 1, 64>}, {pipeline_mode = #tpu.pipeline_mode<synchronous>, transform_indices = @transform_3, window_bounds = array<i64: 64, 192>}, {pipeline_mode = #tpu.pipeline_mode<synchronous>, transform_indices = @transform_4, window_bounds = array<i64: 1, 192>}, {pipeline_mode = #tpu.pipeline_mode<synchronous>, transform_indices = @transform_5, window_bounds = array<i64: 64, 64>}, {pipeline_mode = #tpu.pipeline_mode<synchronous>, transform_indices = @transform_6, window_bounds = array<i64: 1, 64>}, {transform_indices = @transform_7, window_bounds = array<i64: 1, 9, 64>}]} {
    %c0 = arith.constant 0 : index
    %c0_0 = arith.constant 0 : index
    %c0_1 = arith.constant 0 : index
    %0 = vector.load %arg1[%c0, %c0_0, %c0_1] : memref<1x9x64xf32, #tpu.memory_space<vmem>>, vector<1x9x64xf32>
    %1 = vector.shape_cast %0 : vector<1x9x64xf32> to vector<9x64xf32>
    %c0_2 = arith.constant 0 : index
    %c0_3 = arith.constant 0 : index
    %2 = vector.load %arg2[%c0_2, %c0_3] : memref<1x64xf32, #tpu.memory_space<vmem>>, vector<1x64xf32>
    %c0_4 = arith.constant 0 : index
    %c0_5 = arith.constant 0 : index
    %3 = vector.load %arg3[%c0_4, %c0_5] : memref<1x64xf32, #tpu.memory_space<vmem>>, vector<1x64xf32>
    %cst = arith.constant dense<0.000000e+00> : vector<9xf32>
    %4 = vector.multi_reduction <add>, %1, %cst [1] : vector<9x64xf32> to vector<9xf32>
    %5 = vector.shape_cast %4 : vector<9xf32> to vector<9x1xf32>
    %cst_6 = arith.constant 6.400000e+01 : f32
    %6 = vector.broadcast %cst_6 : f32 to vector<9x1xf32>
    %7 = arith.divf %5, %6 : vector<9x1xf32>
    %8 = vector.broadcast %7 : vector<9x1xf32> to vector<9x64xf32>
    %9 = arith.subf %1, %8 : vector<9x64xf32>
    %10 = arith.mulf %9, %9 : vector<9x64xf32>
    %cst_7 = arith.constant dense<0.000000e+00> : vector<9xf32>
    %11 = vector.multi_reduction <add>, %10, %cst_7 [1] : vector<9x64xf32> to vector<9xf32>
    %12 = vector.shape_cast %11 : vector<9xf32> to vector<9x1xf32>
    %cst_8 = arith.constant 6.400000e+01 : f32
    %13 = vector.broadcast %cst_8 : f32 to vector<9x1xf32>
    %14 = arith.divf %12, %13 : vector<9x1xf32>
    %cst_9 = arith.constant 9.99999997E-7 : f32
    %15 = vector.broadcast %cst_9 : f32 to vector<9x1xf32>
    %16 = arith.addf %14, %15 : vector<9x1xf32>
    %17 = math.rsqrt %16 : vector<9x1xf32>
    %18 = vector.broadcast %17 : vector<9x1xf32> to vector<9x64xf32>
    %19 = arith.mulf %9, %18 : vector<9x64xf32>
    %20 = vector.broadcast %2 : vector<1x64xf32> to vector<9x64xf32>
    %21 = arith.mulf %19, %20 : vector<9x64xf32>
    %22 = vector.broadcast %3 : vector<1x64xf32> to vector<9x64xf32>
    %23 = arith.addf %21, %22 : vector<9x64xf32>
    %c0_10 = arith.constant 0 : index
    %c0_11 = arith.constant 0 : index
    %24 = vector.load %arg4[%c0_10, %c0_11] : memref<64x192xf32, #tpu.memory_space<vmem>>, vector<64x192xf32>
    %cst_12 = arith.constant dense<0.000000e+00> : vector<9x192xf32>
    %25 = tpu.matmul %23, %24, %cst_12 {dimension_numbers = #tpu.dot_dimension_numbers<[1], [0], [0], [1], [0, 0, 1, 1], [], []>} : vector<9x64xf32>, vector<64x192xf32>, vector<9x192xf32> -> vector<9x192xf32>
    %c0_13 = arith.constant 0 : index
    %c0_14 = arith.constant 0 : index
    %26 = vector.load %arg5[%c0_13, %c0_14] : memref<1x192xf32, #tpu.memory_space<vmem>>, vector<1x192xf32>
    %27 = vector.broadcast %26 : vector<1x192xf32> to vector<9x192xf32>
    %28 = arith.addf %25, %27 : vector<9x192xf32>
    %29 = vector.extract_strided_slice %28 {offsets = [0, 0], sizes = [9, 16], strides = [1, 1]} : vector<9x192xf32> to vector<9x16xf32>
    %30 = vector.extract_strided_slice %28 {offsets = [0, 64], sizes = [9, 16], strides = [1, 1]} : vector<9x192xf32> to vector<9x16xf32>
    %31 = vector.extract_strided_slice %28 {offsets = [0, 128], sizes = [9, 16], strides = [1, 1]} : vector<9x192xf32> to vector<9x16xf32>
    %cst_15 = arith.constant dense<0.000000e+00> : vector<9x9xf32>
    %32 = tpu.matmul %29, %30, %cst_15 {dimension_numbers = #tpu.dot_dimension_numbers<[1], [1], [0], [0], [0, 0, 1, 0], [], []>} : vector<9x16xf32>, vector<9x16xf32>, vector<9x9xf32> -> vector<9x9xf32>
    %cst_16 = arith.constant 2.500000e-01 : f32
    %33 = vector.broadcast %cst_16 : f32 to vector<9x9xf32>
    %34 = arith.mulf %32, %33 : vector<9x9xf32>
    %cst_17 = arith.constant dense<0xFF800000> : vector<9xf32>
    %35 = vector.multi_reduction <maximumf>, %34, %cst_17 [1] : vector<9x9xf32> to vector<9xf32>
    %36 = vector.shape_cast %35 : vector<9xf32> to vector<9x1xf32>
    %37 = vector.broadcast %36 : vector<9x1xf32> to vector<9x9xf32>
    %38 = arith.subf %34, %37 : vector<9x9xf32>
    %39 = math.exp %38 : vector<9x9xf32>
    %cst_18 = arith.constant dense<0.000000e+00> : vector<9xf32>
    %40 = vector.multi_reduction <add>, %39, %cst_18 [1] : vector<9x9xf32> to vector<9xf32>
    %41 = vector.shape_cast %40 : vector<9xf32> to vector<9x1xf32>
    %42 = vector.broadcast %41 : vector<9x1xf32> to vector<9x9xf32>
    %43 = arith.divf %39, %42 : vector<9x9xf32>
    %cst_19 = arith.constant dense<0.000000e+00> : vector<9x16xf32>
    %44 = tpu.matmul %43, %31, %cst_19 {dimension_numbers = #tpu.dot_dimension_numbers<[1], [0], [0], [1], [0, 0, 1, 1], [], []>} : vector<9x9xf32>, vector<9x16xf32>, vector<9x16xf32> -> vector<9x16xf32>
    %45 = vector.extract_strided_slice %28 {offsets = [0, 16], sizes = [9, 16], strides = [1, 1]} : vector<9x192xf32> to vector<9x16xf32>
    %46 = vector.extract_strided_slice %28 {offsets = [0, 80], sizes = [9, 16], strides = [1, 1]} : vector<9x192xf32> to vector<9x16xf32>
    %47 = vector.extract_strided_slice %28 {offsets = [0, 144], sizes = [9, 16], strides = [1, 1]} : vector<9x192xf32> to vector<9x16xf32>
    %cst_20 = arith.constant dense<0.000000e+00> : vector<9x9xf32>
    %48 = tpu.matmul %45, %46, %cst_20 {dimension_numbers = #tpu.dot_dimension_numbers<[1], [1], [0], [0], [0, 0, 1, 0], [], []>} : vector<9x16xf32>, vector<9x16xf32>, vector<9x9xf32> -> vector<9x9xf32>
    %cst_21 = arith.constant 2.500000e-01 : f32
    %49 = vector.broadcast %cst_21 : f32 to vector<9x9xf32>
    %50 = arith.mulf %48, %49 : vector<9x9xf32>
    %cst_22 = arith.constant dense<0xFF800000> : vector<9xf32>
    %51 = vector.multi_reduction <maximumf>, %50, %cst_22 [1] : vector<9x9xf32> to vector<9xf32>
    %52 = vector.shape_cast %51 : vector<9xf32> to vector<9x1xf32>
    %53 = vector.broadcast %52 : vector<9x1xf32> to vector<9x9xf32>
    %54 = arith.subf %50, %53 : vector<9x9xf32>
    %55 = math.exp %54 : vector<9x9xf32>
    %cst_23 = arith.constant dense<0.000000e+00> : vector<9xf32>
    %56 = vector.multi_reduction <add>, %55, %cst_23 [1] : vector<9x9xf32> to vector<9xf32>
    %57 = vector.shape_cast %56 : vector<9xf32> to vector<9x1xf32>
    %58 = vector.broadcast %57 : vector<9x1xf32> to vector<9x9xf32>
    %59 = arith.divf %55, %58 : vector<9x9xf32>
    %cst_24 = arith.constant dense<0.000000e+00> : vector<9x16xf32>
    %60 = tpu.matmul %59, %47, %cst_24 {dimension_numbers = #tpu.dot_dimension_numbers<[1], [0], [0], [1], [0, 0, 1, 1], [], []>} : vector<9x9xf32>, vector<9x16xf32>, vector<9x16xf32> -> vector<9x16xf32>
    %61 = vector.extract_strided_slice %28 {offsets = [0, 32], sizes = [9, 16], strides = [1, 1]} : vector<9x192xf32> to vector<9x16xf32>
    %62 = vector.extract_strided_slice %28 {offsets = [0, 96], sizes = [9, 16], strides = [1, 1]} : vector<9x192xf32> to vector<9x16xf32>
    %63 = vector.extract_strided_slice %28 {offsets = [0, 160], sizes = [9, 16], strides = [1, 1]} : vector<9x192xf32> to vector<9x16xf32>
    %cst_25 = arith.constant dense<0.000000e+00> : vector<9x9xf32>
    %64 = tpu.matmul %61, %62, %cst_25 {dimension_numbers = #tpu.dot_dimension_numbers<[1], [1], [0], [0], [0, 0, 1, 0], [], []>} : vector<9x16xf32>, vector<9x16xf32>, vector<9x9xf32> -> vector<9x9xf32>
    %cst_26 = arith.constant 2.500000e-01 : f32
    %65 = vector.broadcast %cst_26 : f32 to vector<9x9xf32>
    %66 = arith.mulf %64, %65 : vector<9x9xf32>
    %cst_27 = arith.constant dense<0xFF800000> : vector<9xf32>
    %67 = vector.multi_reduction <maximumf>, %66, %cst_27 [1] : vector<9x9xf32> to vector<9xf32>
    %68 = vector.shape_cast %67 : vector<9xf32> to vector<9x1xf32>
    %69 = vector.broadcast %68 : vector<9x1xf32> to vector<9x9xf32>
    %70 = arith.subf %66, %69 : vector<9x9xf32>
    %71 = math.exp %70 : vector<9x9xf32>
    %cst_28 = arith.constant dense<0.000000e+00> : vector<9xf32>
    %72 = vector.multi_reduction <add>, %71, %cst_28 [1] : vector<9x9xf32> to vector<9xf32>
    %73 = vector.shape_cast %72 : vector<9xf32> to vector<9x1xf32>
    %74 = vector.broadcast %73 : vector<9x1xf32> to vector<9x9xf32>
    %75 = arith.divf %71, %74 : vector<9x9xf32>
    %cst_29 = arith.constant dense<0.000000e+00> : vector<9x16xf32>
    %76 = tpu.matmul %75, %63, %cst_29 {dimension_numbers = #tpu.dot_dimension_numbers<[1], [0], [0], [1], [0, 0, 1, 1], [], []>} : vector<9x9xf32>, vector<9x16xf32>, vector<9x16xf32> -> vector<9x16xf32>
    %77 = vector.extract_strided_slice %28 {offsets = [0, 48], sizes = [9, 16], strides = [1, 1]} : vector<9x192xf32> to vector<9x16xf32>
    %78 = vector.extract_strided_slice %28 {offsets = [0, 112], sizes = [9, 16], strides = [1, 1]} : vector<9x192xf32> to vector<9x16xf32>
    %79 = vector.extract_strided_slice %28 {offsets = [0, 176], sizes = [9, 16], strides = [1, 1]} : vector<9x192xf32> to vector<9x16xf32>
    %cst_30 = arith.constant dense<0.000000e+00> : vector<9x9xf32>
    %80 = tpu.matmul %77, %78, %cst_30 {dimension_numbers = #tpu.dot_dimension_numbers<[1], [1], [0], [0], [0, 0, 1, 0], [], []>} : vector<9x16xf32>, vector<9x16xf32>, vector<9x9xf32> -> vector<9x9xf32>
    %cst_31 = arith.constant 2.500000e-01 : f32
    %81 = vector.broadcast %cst_31 : f32 to vector<9x9xf32>
    %82 = arith.mulf %80, %81 : vector<9x9xf32>
    %cst_32 = arith.constant dense<0xFF800000> : vector<9xf32>
    %83 = vector.multi_reduction <maximumf>, %82, %cst_32 [1] : vector<9x9xf32> to vector<9xf32>
    %84 = vector.shape_cast %83 : vector<9xf32> to vector<9x1xf32>
    %85 = vector.broadcast %84 : vector<9x1xf32> to vector<9x9xf32>
    %86 = arith.subf %82, %85 : vector<9x9xf32>
    %87 = math.exp %86 : vector<9x9xf32>
    %cst_33 = arith.constant dense<0.000000e+00> : vector<9xf32>
    %88 = vector.multi_reduction <add>, %87, %cst_33 [1] : vector<9x9xf32> to vector<9xf32>
    %89 = vector.shape_cast %88 : vector<9xf32> to vector<9x1xf32>
    %90 = vector.broadcast %89 : vector<9x1xf32> to vector<9x9xf32>
    %91 = arith.divf %87, %90 : vector<9x9xf32>
    %cst_34 = arith.constant dense<0.000000e+00> : vector<9x16xf32>
    %92 = tpu.matmul %91, %79, %cst_34 {dimension_numbers = #tpu.dot_dimension_numbers<[1], [0], [0], [1], [0, 0, 1, 1], [], []>} : vector<9x9xf32>, vector<9x16xf32>, vector<9x16xf32> -> vector<9x16xf32>
    %93 = tpu.concatenate %44, %60, %76, %92 in 1 : vector<9x16xf32>, vector<9x16xf32>, vector<9x16xf32>, vector<9x16xf32> -> vector<9x64xf32>
    %c0_35 = arith.constant 0 : index
    %c0_36 = arith.constant 0 : index
    %94 = vector.load %arg6[%c0_35, %c0_36] : memref<64x64xf32, #tpu.memory_space<vmem>>, vector<64x64xf32>
    %cst_37 = arith.constant dense<0.000000e+00> : vector<9x64xf32>
    %95 = tpu.matmul %93, %94, %cst_37 {dimension_numbers = #tpu.dot_dimension_numbers<[1], [0], [0], [1], [0, 0, 1, 1], [], []>} : vector<9x64xf32>, vector<64x64xf32>, vector<9x64xf32> -> vector<9x64xf32>
    %c0_38 = arith.constant 0 : index
    %c0_39 = arith.constant 0 : index
    %96 = vector.load %arg7[%c0_38, %c0_39] : memref<1x64xf32, #tpu.memory_space<vmem>>, vector<1x64xf32>
    %97 = vector.broadcast %96 : vector<1x64xf32> to vector<9x64xf32>
    %98 = arith.addf %95, %97 : vector<9x64xf32>
    %99 = arith.addf %1, %98 : vector<9x64xf32>
    %c0_40 = arith.constant 0 : index
    %c0_41 = arith.constant 0 : index
    %c0_42 = arith.constant 0 : index
    %100 = vector.load %arg8[%c0_40, %c0_41, %c0_42] : memref<1x9x64xf32, #tpu.memory_space<vmem>>, vector<1x9x64xf32>
    %101 = vector.shape_cast %100 : vector<1x9x64xf32> to vector<9x64xf32>
    %102 = vector.shape_cast %99 : vector<9x64xf32> to vector<1x9x64xf32>
    tpu.vector_store %arg8[%c0_40, %c0_41, %c0_42], %102 {strides = array<i32>} : memref<1x9x64xf32, #tpu.memory_space<vmem>>, vector<1x9x64xf32>,
    return
  }
  func.func @transform_0(%arg0: i32) -> (i32, i32, i32) {
    %c0_i32 = arith.constant 0 : i32
    %c0_i32_0 = arith.constant 0 : i32
    %c0_i32_1 = arith.constant 0 : i32
    return %arg0, %c0_i32, %c0_i32_0 : i32, i32, i32
  }
  func.func @transform_1(%arg0: i32) -> (i32, i32) {
    %c0_i32 = arith.constant 0 : i32
    %c0_i32_0 = arith.constant 0 : i32
    %c0_i32_1 = arith.constant 0 : i32
    return %c0_i32, %c0_i32_0 : i32, i32
  }
  func.func @transform_2(%arg0: i32) -> (i32, i32) {
    %c0_i32 = arith.constant 0 : i32
    %c0_i32_0 = arith.constant 0 : i32
    %c0_i32_1 = arith.constant 0 : i32
    return %c0_i32, %c0_i32_0 : i32, i32
  }
  func.func @transform_3(%arg0: i32) -> (i32, i32) {
    %c0_i32 = arith.constant 0 : i32
    %c0_i32_0 = arith.constant 0 : i32
    %c0_i32_1 = arith.constant 0 : i32
    return %c0_i32, %c0_i32_0 : i32, i32
  }
  func.func @transform_4(%arg0: i32) -> (i32, i32) {
    %c0_i32 = arith.constant 0 : i32
    %c0_i32_0 = arith.constant 0 : i32
    %c0_i32_1 = arith.constant 0 : i32
    return %c0_i32, %c0_i32_0 : i32, i32
  }
  func.func @transform_5(%arg0: i32) -> (i32, i32) {
    %c0_i32 = arith.constant 0 : i32
    %c0_i32_0 = arith.constant 0 : i32
    %c0_i32_1 = arith.constant 0 : i32
    return %c0_i32, %c0_i32_0 : i32, i32
  }
  func.func @transform_6(%arg0: i32) -> (i32, i32) {
    %c0_i32 = arith.constant 0 : i32
    %c0_i32_0 = arith.constant 0 : i32
    %c0_i32_1 = arith.constant 0 : i32
    return %c0_i32, %c0_i32_0 : i32, i32
  }
  func.func @transform_7(%arg0: i32) -> (i32, i32, i32) {
    %c0_i32 = arith.constant 0 : i32
    %c0_i32_0 = arith.constant 0 : i32
    %c0_i32_1 = arith.constant 0 : i32
    return %arg0, %c0_i32, %c0_i32_0 : i32, i32, i32
  }
}

module attributes {stable_mosaic.version = 11 : i64} {
  func.func @_mlp_block_kernel(%arg0: i32, %arg1: memref<8x64xf32, #tpu.memory_space<vmem>>, %arg2: memref<1x64xf32, #tpu.memory_space<vmem>>, %arg3: memref<1x64xf32, #tpu.memory_space<vmem>>, %arg4: memref<64x256xf32, #tpu.memory_space<vmem>>, %arg5: memref<1x256xf32, #tpu.memory_space<vmem>>, %arg6: memref<256x64xf32, #tpu.memory_space<vmem>>, %arg7: memref<1x64xf32, #tpu.memory_space<vmem>>, %arg8: memref<8x64xf32, #tpu.memory_space<vmem>>) attributes {dimension_semantics = [#tpu.dimension_semantics<parallel>], iteration_bounds = array<i64: 3>, scalar_prefetch = 0 : i64, scratch_operands = 0 : i64, tpu.core_type = #tpu.core_type<tc>, window_params = [{transform_indices = @transform_0, window_bounds = array<i64: 8, 64>}, {pipeline_mode = #tpu.pipeline_mode<synchronous>, transform_indices = @transform_1, window_bounds = array<i64: 1, 64>}, {pipeline_mode = #tpu.pipeline_mode<synchronous>, transform_indices = @transform_2, window_bounds = array<i64: 1, 64>}, {pipeline_mode = #tpu.pipeline_mode<synchronous>, transform_indices = @transform_3, window_bounds = array<i64: 64, 256>}, {pipeline_mode = #tpu.pipeline_mode<synchronous>, transform_indices = @transform_4, window_bounds = array<i64: 1, 256>}, {pipeline_mode = #tpu.pipeline_mode<synchronous>, transform_indices = @transform_5, window_bounds = array<i64: 256, 64>}, {pipeline_mode = #tpu.pipeline_mode<synchronous>, transform_indices = @transform_6, window_bounds = array<i64: 1, 64>}, {transform_indices = @transform_7, window_bounds = array<i64: 8, 64>}]} {
    %c0 = arith.constant 0 : index
    %c0_0 = arith.constant 0 : index
    %0 = vector.load %arg1[%c0, %c0_0] : memref<8x64xf32, #tpu.memory_space<vmem>>, vector<8x64xf32>
    %c0_1 = arith.constant 0 : index
    %c0_2 = arith.constant 0 : index
    %1 = vector.load %arg2[%c0_1, %c0_2] : memref<1x64xf32, #tpu.memory_space<vmem>>, vector<1x64xf32>
    %c0_3 = arith.constant 0 : index
    %c0_4 = arith.constant 0 : index
    %2 = vector.load %arg3[%c0_3, %c0_4] : memref<1x64xf32, #tpu.memory_space<vmem>>, vector<1x64xf32>
    %cst = arith.constant dense<0.000000e+00> : vector<8xf32>
    %3 = vector.multi_reduction <add>, %0, %cst [1] : vector<8x64xf32> to vector<8xf32>
    %4 = vector.shape_cast %3 : vector<8xf32> to vector<8x1xf32>
    %cst_5 = arith.constant 6.400000e+01 : f32
    %5 = vector.broadcast %cst_5 : f32 to vector<8x1xf32>
    %6 = arith.divf %4, %5 : vector<8x1xf32>
    %7 = vector.broadcast %6 : vector<8x1xf32> to vector<8x64xf32>
    %8 = arith.subf %0, %7 : vector<8x64xf32>
    %9 = arith.mulf %8, %8 : vector<8x64xf32>
    %cst_6 = arith.constant dense<0.000000e+00> : vector<8xf32>
    %10 = vector.multi_reduction <add>, %9, %cst_6 [1] : vector<8x64xf32> to vector<8xf32>
    %11 = vector.shape_cast %10 : vector<8xf32> to vector<8x1xf32>
    %cst_7 = arith.constant 6.400000e+01 : f32
    %12 = vector.broadcast %cst_7 : f32 to vector<8x1xf32>
    %13 = arith.divf %11, %12 : vector<8x1xf32>
    %cst_8 = arith.constant 9.99999997E-7 : f32
    %14 = vector.broadcast %cst_8 : f32 to vector<8x1xf32>
    %15 = arith.addf %13, %14 : vector<8x1xf32>
    %16 = math.rsqrt %15 : vector<8x1xf32>
    %17 = vector.broadcast %16 : vector<8x1xf32> to vector<8x64xf32>
    %18 = arith.mulf %8, %17 : vector<8x64xf32>
    %19 = vector.broadcast %1 : vector<1x64xf32> to vector<8x64xf32>
    %20 = arith.mulf %18, %19 : vector<8x64xf32>
    %21 = vector.broadcast %2 : vector<1x64xf32> to vector<8x64xf32>
    %22 = arith.addf %20, %21 : vector<8x64xf32>
    %cst_9 = arith.constant 0.000000e+00 : f32
    %23 = vector.broadcast %cst_9 : f32 to vector<8x64xf32>
    %c0_i32 = arith.constant 0 : i32
    %c2_i32 = arith.constant 2 : i32
    %24 = arith.addi %c0_i32, %c2_i32 : i32
    %c1_i32 = arith.constant 1 : i32
    %25 = scf.for %arg9 = %c0_i32 to %24 step %c1_i32 iter_args(%arg10 = %23) -> (vector<8x64xf32>)  : i32 {
      %c128_i32 = arith.constant 128 : i32
      %31 = arith.muli %arg9, %c128_i32 : i32
      %32 = tpu.assume_multiple %31, 128 : i32
      %c0_15 = arith.constant 0 : index
      %33 = arith.index_cast %32 : i32 to index
      %34 = vector.load %arg4[%c0_15, %33] : memref<64x256xf32, #tpu.memory_space<vmem>>, vector<64x128xf32>
      %c0_16 = arith.constant 0 : index
      %35 = arith.index_cast %32 : i32 to index
      %36 = vector.load %arg5[%c0_16, %35] : memref<1x256xf32, #tpu.memory_space<vmem>>, vector<1x128xf32>
      %37 = arith.index_cast %32 : i32 to index
      %c0_17 = arith.constant 0 : index
      %38 = vector.load %arg6[%37, %c0_17] : memref<256x64xf32, #tpu.memory_space<vmem>>, vector<128x64xf32>
      %cst_18 = arith.constant dense<0.000000e+00> : vector<8x128xf32>
      %39 = tpu.matmul %22, %34, %cst_18 {dimension_numbers = #tpu.dot_dimension_numbers<[1], [0], [0], [1], [0, 0, 1, 1], [], []>} : vector<8x64xf32>, vector<64x128xf32>, vector<8x128xf32> -> vector<8x128xf32>
      %40 = vector.broadcast %36 : vector<1x128xf32> to vector<8x128xf32>
      %41 = arith.addf %39, %40 : vector<8x128xf32>
      %cst_19 = arith.constant 5.000000e-01 : f32
      %42 = vector.broadcast %cst_19 : f32 to vector<8x128xf32>
      %43 = arith.mulf %42, %41 : vector<8x128xf32>
      %cst_20 = arith.constant 0.707106769 : f32
      %44 = vector.broadcast %cst_20 : f32 to vector<8x128xf32>
      %45 = arith.mulf %41, %44 : vector<8x128xf32>
      %46 = math.erf %45 : vector<8x128xf32>
      %cst_21 = arith.constant 1.000000e+00 : f32
      %47 = vector.broadcast %cst_21 : f32 to vector<8x128xf32>
      %48 = arith.addf %47, %46 : vector<8x128xf32>
      %49 = arith.mulf %43, %48 : vector<8x128xf32>
      %cst_22 = arith.constant dense<0.000000e+00> : vector<8x64xf32>
      %50 = tpu.matmul %49, %38, %cst_22 {dimension_numbers = #tpu.dot_dimension_numbers<[1], [0], [0], [1], [0, 0, 1, 1], [], []>} : vector<8x128xf32>, vector<128x64xf32>, vector<8x64xf32> -> vector<8x64xf32>
      %51 = arith.addf %arg10, %50 : vector<8x64xf32>
      scf.yield %51 : vector<8x64xf32>
    }
    %c2_i32_10 = arith.constant 2 : i32
    %26 = arith.addf %0, %25 : vector<8x64xf32>
    %c0_11 = arith.constant 0 : index
    %c0_12 = arith.constant 0 : index
    %27 = vector.load %arg7[%c0_11, %c0_12] : memref<1x64xf32, #tpu.memory_space<vmem>>, vector<1x64xf32>
    %28 = vector.broadcast %27 : vector<1x64xf32> to vector<8x64xf32>
    %29 = arith.addf %26, %28 : vector<8x64xf32>
    %c0_13 = arith.constant 0 : index
    %c0_14 = arith.constant 0 : index
    %30 = vector.load %arg8[%c0_13, %c0_14] : memref<8x64xf32, #tpu.memory_space<vmem>>, vector<8x64xf32>
    tpu.vector_store %arg8[%c0_13, %c0_14], %29 {strides = array<i32>} : memref<8x64xf32, #tpu.memory_space<vmem>>, vector<8x64xf32>,
    return
  }
  func.func @transform_0(%arg0: i32) -> (i32, i32) {
    %c0_i32 = arith.constant 0 : i32
    %c0_i32_0 = arith.constant 0 : i32
    return %arg0, %c0_i32 : i32, i32
  }
  func.func @transform_1(%arg0: i32) -> (i32, i32) {
    %c0_i32 = arith.constant 0 : i32
    %c0_i32_0 = arith.constant 0 : i32
    %c0_i32_1 = arith.constant 0 : i32
    return %c0_i32, %c0_i32_0 : i32, i32
  }
  func.func @transform_2(%arg0: i32) -> (i32, i32) {
    %c0_i32 = arith.constant 0 : i32
    %c0_i32_0 = arith.constant 0 : i32
    %c0_i32_1 = arith.constant 0 : i32
    return %c0_i32, %c0_i32_0 : i32, i32
  }
  func.func @transform_3(%arg0: i32) -> (i32, i32) {
    %c0_i32 = arith.constant 0 : i32
    %c0_i32_0 = arith.constant 0 : i32
    %c0_i32_1 = arith.constant 0 : i32
    return %c0_i32, %c0_i32_0 : i32, i32
  }
  func.func @transform_4(%arg0: i32) -> (i32, i32) {
    %c0_i32 = arith.constant 0 : i32
    %c0_i32_0 = arith.constant 0 : i32
    %c0_i32_1 = arith.constant 0 : i32
    return %c0_i32, %c0_i32_0 : i32, i32
  }
  func.func @transform_5(%arg0: i32) -> (i32, i32) {
    %c0_i32 = arith.constant 0 : i32
    %c0_i32_0 = arith.constant 0 : i32
    %c0_i32_1 = arith.constant 0 : i32
    return %c0_i32, %c0_i32_0 : i32, i32
  }
  func.func @transform_6(%arg0: i32) -> (i32, i32) {
    %c0_i32 = arith.constant 0 : i32
    %c0_i32_0 = arith.constant 0 : i32
    %c0_i32_1 = arith.constant 0 : i32
    return %c0_i32, %c0_i32_0 : i32, i32
  }
  func.func @transform_7(%arg0: i32) -> (i32, i32) {
    %c0_i32 = arith.constant 0 : i32
    %c0_i32_0 = arith.constant 0 : i32
    return %arg0, %c0_i32 : i32, i32
  }
}

</mosaic_0001>

<llo_original>
// kernel: block_forward.3
$region0: #{block_forward.3}
  #allocation0 [shape = 'u32[]', space=smem, size = 0x4, offset = 0x4, fixed_abs, tag = 'smem constant byte address 0x4 - core index']
  #allocation1 [shape = 'u32[144,128]{1,0:T(1,128)}', space=vmem, size = 0x12000, scoped, tag = 'internal scratch']
  %s0 = inlined_call_operand.vmem [shape: f32[18,64], index: 0, kind: input, shape index: {}]
  %s1 = inlined_call_operand.vmem [shape: f32[1,64], index: 1, kind: input, shape index: {}]
  %s2 = inlined_call_operand.vmem [shape: f32[1,64], index: 2, kind: input, shape index: {}]
  %s3 = inlined_call_operand.vmem [shape: f32[64,256], index: 3, kind: input, shape index: {}]
  %s4 = inlined_call_operand.vmem [shape: f32[1,256], index: 4, kind: input, shape index: {}]
  %s5 = inlined_call_operand.vmem [shape: f32[256,64], index: 5, kind: input, shape index: {}]
  %s6 = inlined_call_operand.vmem [shape: f32[1,64], index: 6, kind: input, shape index: {}]
  %s7 = inlined_call_operand.vmem [shape: f32[18,64], index: 7, kind: output, shape index: {}]
  %s8 = sld [smem:[#allocation0]]
  $region68: #{block_forward.3} parent=0
    _
  %s10 = ssub.s32 1, %s8
  %s11 = scalar_select 0, %s10, %s8
  loop: start=0, step=1, limit=5
  $region2: #{block_forward.3} parent=0 // loop_pre_header
    _
  $region3: #{block_forward.3} parent=0 // loop_header
    %s13 = sphi 0, %s17
    %p14 = scmp.ge.s32.totalorder %s13, 5
    %s23 = sphi 0, %s25
    %s26 = sphi 0, %s23
    %s27 = sphi 0, %s26
    %s43 = sphi 0, %s27
    %s47 = sphi 0, %s47
    %s49 = sphi 0, %s47
    %s50 = sphi 0, %s49
    %s64 = sphi 0, %s50
    %s68 = sphi 0, %s68
    %s70 = sphi 0, %s68
    %s71 = sphi 0, %s70
    %s85 = sphi 0, %s71
    %s89 = sphi 0, %s89
    %s91 = sphi 0, %s89
    %s92 = sphi 0, %s91
    %s106 = sphi 0, %s92
    %s110 = sphi 0, %s110
    %s112 = sphi 0, %s110
    %s113 = sphi 0, %s112
    %s127 = sphi 0, %s113
    %s131 = sphi 0, %s131
    %s133 = sphi 0, %s131
    %s134 = sphi 0, %s133
    %s148 = sphi 0, %s134
    %s152 = sphi 0, %s152
    %s154 = sphi 0, %s152
    %s155 = sphi 0, %s154
    %s169 = sphi 0, %s155
    %s175 = sphi 0, %s177
    %s178 = sphi 0, %s175
    %s179 = sphi 0, %s178
    %s195 = sphi 0, %s179
  $region4: #{block_forward.3} parent=0 // loop_header_branch
    %16 = sbr.rel (%p14) target = $region8
  $region5: #{block_forward.3} parent=0 // loop_body
    %s18 = ssub.s32 %s13, 1
    %s19 = ssub.s32 %s13, 2
    %s20 = sadd.s32 %s13, 1
    %s21 = ssub.s32 %s13, %s20
    %p22 = scmp.eq.s32.totalorder %s21, 0
    %s24 = sadd.s32 %s23, 1
    %s25 = scalar_select %p22, %s23, %s24
    %p28 = pneg %p22
    %p29 = scmp.eq.s32.totalorder %s13, 2
    %p30 = por %p28, %p29
    %p31 = scmp.ne.s32.totalorder %s23, %s26
    %p32 = scmp.eq.s32.totalorder %s13, 0
    %p33 = por %p31, %p32
    %p34 = scmp.ne.s32.totalorder %s23, %s26
    %p35 = scmp.eq.s32.totalorder %s18, 2
    %p36 = por %p34, %p35
    %p37 = scmp.ne.s32.totalorder %s26, %s27
    %p38 = scmp.eq.s32.totalorder %s18, 0
    %p39 = por %p37, %p38
    %p40 = scmp.ne.s32.totalorder %s26, %s27
    %p41 = scmp.eq.s32.totalorder %s19, 2
    %p42 = por %p40, %p41
    %p44 = scmp.ne.s32.totalorder %s27, %s43
    %p45 = scmp.eq.s32.totalorder %s19, 0
    %p46 = por %p44, %p45
    %s48 = sadd.s32 %s47, 1
    %p51 = scmp.eq.s32.totalorder %s13, 2
    %p52 = scmp.ne.s32.totalorder %s47, %s49
    %p53 = scmp.eq.s32.totalorder %s13, 0
    %p54 = por %p52, %p53
    %p55 = scmp.ne.s32.totalorder %s47, %s49
    %p56 = scmp.eq.s32.totalorder %s18, 2
    %p57 = por %p55, %p56
    %p58 = scmp.ne.s32.totalorder %s49, %s50
    %p59 = scmp.eq.s32.totalorder %s18, 0
    %p60 = por %p58, %p59
    %p61 = scmp.ne.s32.totalorder %s49, %s50
    %p62 = scmp.eq.s32.totalorder %s19, 2
    %p63 = por %p61, %p62
    %p65 = scmp.ne.s32.totalorder %s50, %s64
    %p66 = scmp.eq.s32.totalorder %s19, 0
    %p67 = por %p65, %p66
    %s69 = sadd.s32 %s68, 1
    %p72 = scmp.eq.s32.totalorder %s13, 2
    %p73 = scmp.ne.s32.totalorder %s68, %s70
    %p74 = scmp.eq.s32.totalorder %s13, 0
    %p75 = por %p73, %p74
    %p76 = scmp.ne.s32.totalorder %s68, %s70
    %p77 = scmp.eq.s32.totalorder %s18, 2
    %p78 = por %p76, %p77
    %p79 = scmp.ne.s32.totalorder %s70, %s71
    %p80 = scmp.eq.s32.totalorder %s18, 0
    %p81 = por %p79, %p80
    %p82 = scmp.ne.s32.totalorder %s70, %s71
    %p83 = scmp.eq.s32.totalorder %s19, 2
    %p84 = por %p82, %p83
    %p86 = scmp.ne.s32.totalorder %s71, %s85
    %p87 = scmp.eq.s32.totalorder %s19, 0
    %p88 = por %p86, %p87
    %s90 = sadd.s32 %s89, 1
    %p93 = scmp.eq.s32.totalorder %s13, 2
    %p94 = scmp.ne.s32.totalorder %s89, %s91
    %p95 = scmp.eq.s32.totalorder %s13, 0
    %p96 = por %p94, %p95
    %p97 = scmp.ne.s32.totalorder %s89, %s91
    %p98 = scmp.eq.s32.totalorder %s18, 2
    %p99 = por %p97, %p98
    %p100 = scmp.ne.s32.totalorder %s91, %s92
    %p101 = scmp.eq.s32.totalorder %s18, 0
    %p102 = por %p100, %p101
    %p103 = scmp.ne.s32.totalorder %s91, %s92
    %p104 = scmp.eq.s32.totalorder %s19, 2
    %p105 = por %p103, %p104
    %p107 = scmp.ne.s32.totalorder %s92, %s106
    %p108 = scmp.eq.s32.totalorder %s19, 0
    %p109 = por %p107, %p108
    %s111 = sadd.s32 %s110, 1
    %p114 = scmp.eq.s32.totalorder %s13, 2
    %p115 = scmp.ne.s32.totalorder %s110, %s112
    %p116 = scmp.eq.s32.totalorder %s13, 0
    %p117 = por %p115, %p116
    %p118 = scmp.ne.s32.totalorder %s110, %s112
    %p119 = scmp.eq.s32.totalorder %s18, 2
    %p120 = por %p118, %p119
    %p121 = scmp.ne.s32.totalorder %s112, %s113
    %p122 = scmp.eq.s32.totalorder %s18, 0
    %p123 = por %p121, %p122
    %p124 = scmp.ne.s32.totalorder %s112, %s113
    %p125 = scmp.eq.s32.totalorder %s19, 2
    %p126 = por %p124, %p125
    %p128 = scmp.ne.s32.totalorder %s113, %s127
    %p129 = scmp.eq.s32.totalorder %s19, 0
    %p130 = por %p128, %p129
    %s132 = sadd.s32 %s131, 1
    %p135 = scmp.eq.s32.totalorder %s13, 2
    %p136 = scmp.ne.s32.totalorder %s131, %s133
    %p137 = scmp.eq.s32.totalorder %s13, 0
    %p138 = por %p136, %p137
    %p139 = scmp.ne.s32.totalorder %s131, %s133
    %p140 = scmp.eq.s32.totalorder %s18, 2
    %p141 = por %p139, %p140
    %p142 = scmp.ne.s32.totalorder %s133, %s134
    %p143 = scmp.eq.s32.totalorder %s18, 0
    %p144 = por %p142, %p143
    %p145 = scmp.ne.s32.totalorder %s133, %s134
    %p146 = scmp.eq.s32.totalorder %s19, 2
    %p147 = por %p145, %p146
    %p149 = scmp.ne.s32.totalorder %s134, %s148
    %p150 = scmp.eq.s32.totalorder %s19, 0
    %p151 = por %p149, %p150
    %s153 = sadd.s32 %s152, 1
    %p156 = scmp.eq.s32.totalorder %s13, 2
    %p157 = scmp.ne.s32.totalorder %s152, %s154
    %p158 = scmp.eq.s32.totalorder %s13, 0
    %p159 = por %p157, %p158
    %p160 = scmp.ne.s32.totalorder %s152, %s154
    %p161 = scmp.eq.s32.totalorder %s18, 2
    %p162 = por %p160, %p161
    %p163 = scmp.ne.s32.totalorder %s154, %s155
    %p164 = scmp.eq.s32.totalorder %s18, 0
    %p165 = por %p163, %p164
    %p166 = scmp.ne.s32.totalorder %s154, %s155
    %p167 = scmp.eq.s32.totalorder %s19, 2
    %p168 = por %p166, %p167
    %p170 = scmp.ne.s32.totalorder %s155, %s169
    %p171 = scmp.eq.s32.totalorder %s19, 0
    %p172 = por %p170, %p171
    %s173 = ssub.s32 %s13, %s20
    %p174 = scmp.eq.s32.totalorder %s173, 0
    %s176 = sadd.s32 %s175, 1
    %s177 = scalar_select %p174, %s175, %s176
    %p180 = pneg %p174
    %p181 = scmp.eq.s32.totalorder %s13, 2
    %p182 = por %p180, %p181
    %p183 = scmp.ne.s32.totalorder %s175, %s178
    %p184 = scmp.eq.s32.totalorder %s13, 0
    %p185 = por %p183, %p184
    %p186 = scmp.ne.s32.totalorder %s175, %s178
    %p187 = scmp.eq.s32.totalorder %s18, 2
    %p188 = por %p186, %p187
    %p189 = scmp.ne.s32.totalorder %s178, %s179
    %p190 = scmp.eq.s32.totalorder %s18, 0
    %p191 = por %p189, %p190
    %p192 = scmp.ne.s32.totalorder %s178, %s179
    %p193 = scmp.eq.s32.totalorder %s19, 2
    %p194 = por %p192, %p193
    %p196 = scmp.ne.s32.totalorder %s179, %s195
    %p197 = scmp.eq.s32.totalorder %s19, 0
    %p198 = por %p196, %p197
    %p199 = scmp.le.s32.totalorder 1, %s13
    %p200 = scmp.lt.s32.totalorder %s13, 4
    %p201 = pnand %p199, %p200
    %p202 = pneg %p201
    // Predicated region
    $region9: #{block_forward.3} parent=5 // pred_check
      _
    $region10: #{block_forward.3} parent=5 // pred_check_branch
      %204 = sbr.rel (%p201) target = $region12
    $region11: #{block_forward.3} parent=5 // pred_region
      %s205 = ssub.s32 %s13, 1
      // Predicated region
      $region13: #{block_forward.3} parent=11 // pred_check
        %p206 = pneg %p60
      $region14: #{block_forward.3} parent=11 // pred_check_branch
        %208 = sbr.rel (%p206) target = $region16
      $region15: #{block_forward.3} parent=11 // pred_region
        _
      $region16: #{block_forward.3} parent=11 // pred_fallthru
        _
      // Predicated region
      $region17: #{block_forward.3} parent=11 // pred_check
        %p209 = pneg %p81
      $region18: #{block_forward.3} parent=11 // pred_check_branch
        %211 = sbr.rel (%p209) target = $region20
      $region19: #{block_forward.3} parent=11 // pred_region
        _
      $region20: #{block_forward.3} parent=11 // pred_fallthru
        _
      // Predicated region
      $region21: #{block_forward.3} parent=11 // pred_check
        %p212 = pneg %p102
      $region22: #{block_forward.3} parent=11 // pred_check_branch
        %214 = sbr.rel (%p212) target = $region24
      $region23: #{block_forward.3} parent=11 // pred_region
        _
      $region24: #{block_forward.3} parent=11 // pred_fallthru
        _
      // Predicated region
      $region25: #{block_forward.3} parent=11 // pred_check
        %p215 = pneg %p123
      $region26: #{block_forward.3} parent=11 // pred_check_branch
        %217 = sbr.rel (%p215) target = $region28
      $region27: #{block_forward.3} parent=11 // pred_region
        _
      $region28: #{block_forward.3} parent=11 // pred_fallthru
        _
      // Predicated region
      $region29: #{block_forward.3} parent=11 // pred_check
        %p218 = pneg %p144
      $region30: #{block_forward.3} parent=11 // pred_check_branch
        %220 = sbr.rel (%p218) target = $region32
      $region31: #{block_forward.3} parent=11 // pred_region
        _
      $region32: #{block_forward.3} parent=11 // pred_fallthru
        _
      // Predicated region
      $region33: #{block_forward.3} parent=11 // pred_check
        %p221 = pneg %p165
      $region34: #{block_forward.3} parent=11 // pred_check_branch
        %223 = sbr.rel (%p221) target = $region36
      $region35: #{block_forward.3} parent=11 // pred_region
        _
      $region36: #{block_forward.3} parent=11 // pred_fallthru
        _
    $region12: #{block_forward.3} parent=5 // pred_fallthru
      _
    %p224 = scmp.lt.s32.totalorder %s13, 3
    // Predicated region
    $region37: #{block_forward.3} parent=5 // pred_check
      %p225 = pneg %p224
    $region38: #{block_forward.3} parent=5 // pred_check_branch
      %227 = sbr.rel (%p225) target = $region40
    $region39: #{block_forward.3} parent=5 // pred_region
      // Predicated region
      $region41: #{block_forward.3} parent=39 // pred_check
        %p228 = pneg %p33
      $region42: #{block_forward.3} parent=39 // pred_check_branch
        %230 = sbr.rel (%p228) target = $region44
      $region43: #{block_forward.3} parent=39 // pred_region
        %p231 = scmp.lt.s32.totalorder %s13, 2
        %s232 = scalar_select %p231, %s13, 2
        %s233 = smul.addr %s232, 8
        %s234 = scalar_lea.vmem %s0, %s233
      $region44: #{block_forward.3} parent=39 // pred_fallthru
        _
    $region40: #{block_forward.3} parent=5 // pred_fallthru
      _
    %p235 = scmp.le.s32.totalorder 1, %s13
    %p236 = scmp.lt.s32.totalorder %s13, 4
    %p237 = pnand %p235, %p236
    %p238 = pneg %p237
    // Predicated region
    $region45: #{block_forward.3} parent=5 // pred_check
      _
    $region46: #{block_forward.3} parent=5 // pred_check_branch
      %240 = sbr.rel (%p237) target = $region48
    $region47: #{block_forward.3} parent=5 // pred_region
      %s241 = ssub.s32 %s13, 1
      %p242 = scmp.lt.s32.totalorder %s18, 2
      %s243 = scalar_select %p242, %s18, 2
      %s244 = smul.addr %s243, 8
      %s245 = scalar_lea.vmem %s0, %s244
      %p246 = pneg %p39
      %p247 = pneg %p36
      %p248 = pneg %p60
      %p249 = pneg %p57
      %p250 = pneg %p81
      %p251 = pneg %p78
      %p252 = pneg %p102
      %p253 = pneg %p99
      %p254 = pneg %p123
      %p255 = pneg %p120
      %p256 = pneg %p144
      %p257 = pneg %p141
      %p258 = pneg %p165
      %p259 = pneg %p162
      %p260 = pneg %p191
      %p261 = pneg %p188
      %p262 = scmp.lt.s32.totalorder %s18, 2
      %s263 = scalar_select %p262, %s18, 2
      %s264 = smul.addr %s263, 8
      %s265 = scalar_lea.vmem %s7, %s264
      %p266 = scmp.lt.s32.totalorder %s18, 2
      %s267 = scalar_select %p266, %s18, 2
      %s268 = smul.addr %s267, 8
      %s269 = scalar_lea.vmem %s0, %s268
      %p270 = scmp.lt.s32.totalorder %s18, 2
      %s271 = scalar_select %p270, %s18, 2
      %s272 = smul.addr %s271, 8
      %s273 = scalar_lea.vmem %s7, %s272
      %v274 = vld [vmem:[%s269] sm:$0xff]
      %v275 = vld [vmem:[%s1] sm:$0x1]
      %v276 = vld [vmem:[%s2] sm:$0x1]
      %vm277 = vcmask 523264
      %v278 = vsel %vm277, %v274, 0.0
      %279 = vadd.xlane.f32.xlu0 %v278
      %v280 = vpop.xlane.xlu0 %279
      %v281 = vrcp.pop 64.0
      %v282 = vmul.f32 %v280, %v281
      %v283 = vsub.f32 %v274, %v282
      %v284 = vmul.f32 %v283, %v283
      %v285 = vsel %vm277, %v284, 0.0
      %286 = vadd.xlane.f32.xlu0 %v285
      %v287 = vpop.xlane.xlu0 %286
      %v288 = vmul.f32 %v287, %v281
      %v289 = vadd.f32 %v288, 1e-06
      %v290 = vrsqrt.pop %v289
      %v291 = vmul.f32 %v283, %v290
      %v293 = vlaneseq
      %v294 = vshrl.u32 %v293, 7
      %v295 = vsub.s32 0, %v294
      %v296 = vrot.slane %v275, %v295
      %v298 = vmul.f32 %v291, %v296
      %v300 = vlaneseq
      %v301 = vshrl.u32 %v300, 7
      %v302 = vsub.s32 0, %v301
      %v303 = vrot.slane %v276, %v302
      %v305 = vadd.f32 %v298, %v303
      loop: start=0, step=1, limit=2
      $region49: #{block_forward.3} parent=47 // loop_pre_header
        _
      $region50: #{block_forward.3} parent=47 // loop_header
        %s307 = sphi 0, %s311
        %p308 = scmp.ge.s32.totalorder %s307, 2
        %v312 = vphi 0.0, %v499
      $region51: #{block_forward.3} parent=47 // loop_header_branch
        %310 = sbr.rel (%p308) target = $region55
      $region52: #{block_forward.3} parent=47 // loop_body
        %s313 = smul.u32 %s307, 128
        %s314 = sshra.s32 %s313, 7
        %s315 = sand.u32 %s313, 127
        %s316 = smul.addr %s314, 8
        %s317 = scalar_lea.vmem %s3, %s316
        %v318 = vld [vmem:[%s317] sm:$0xff]
        %v319 = vld [vmem:[%s317 + $0x10] sm:$0xff]
        %v320 = vld [vmem:[%s317 + $0x20] sm:$0xff]
        %v321 = vld [vmem:[%s317 + $0x30] sm:$0xff]
        %v322 = vld [vmem:[%s317 + $0x40] sm:$0xff]
        %v323 = vld [vmem:[%s317 + $0x50] sm:$0xff]
        %v324 = vld [vmem:[%s317 + $0x60] sm:$0xff]
        %v325 = vld [vmem:[%s317 + $0x70] sm:$0xff]
        %s326 = scalar_lea.vmem %s4, %s314
        %v327 = vld [vmem:[%s326] sm:$0x1]
        %s328 = scalar_lea.vmem %s5, %s313
        %v329 = vld [vmem:[%s328] sm:$0xff]
        %v330 = vld [vmem:[%s328 + $0x8] sm:$0xff]
        %v331 = vld [vmem:[%s328 + $0x10] sm:$0xff]
        %v332 = vld [vmem:[%s328 + $0x18] sm:$0xff]
        %v333 = vld [vmem:[%s328 + $0x20] sm:$0xff]
        %v334 = vld [vmem:[%s328 + $0x28] sm:$0xff]
        %v335 = vld [vmem:[%s328 + $0x30] sm:$0xff]
        %v336 = vld [vmem:[%s328 + $0x38] sm:$0xff]
        %v337 = vld [vmem:[%s328 + $0x40] sm:$0xff]
        %v338 = vld [vmem:[%s328 + $0x48] sm:$0xff]
        %v339 = vld [vmem:[%s328 + $0x50] sm:$0xff]
        %v340 = vld [vmem:[%s328 + $0x58] sm:$0xff]
        %v341 = vld [vmem:[%s328 + $0x60] sm:$0xff]
        %v342 = vld [vmem:[%s328 + $0x68] sm:$0xff]
        %v343 = vld [vmem:[%s328 + $0x70] sm:$0xff]
        %v344 = vld [vmem:[%s328 + $0x78] sm:$0xff]
        %v346 = vlaneseq
        %v347 = vshrl.u32 %v346, 7
        %v348 = vsub.s32 0, %v347
        %v349 = vrot.slane %v327, %v348
        %v352 = vsel %vm277, %v305, 0
        %354 = vmatprep.subr.mxu0 0.0
        %355 = vmatpush1.msra.mxu0 0.0
        %356 = vmatprep.subr.mxu0 0.0
        %357 = vmatpush1.msra.mxu0 0.0
        %358 = vmatprep.subr.mxu0 0.0
        %359 = vmatpush1.msra.mxu0 0.0
        %360 = vmatprep.subr.mxu0 0.0
        %361 = vmatpush1.msra.mxu0 0.0
        %362 = vmatprep.subr.mxu0 0.0
        %363 = vmatpush1.msra.mxu0 0.0
        %364 = vmatprep.subr.mxu0 0.0
        %365 = vmatpush1.msra.mxu0 0.0
        %366 = vmatprep.subr.mxu0 0.0
        %367 = vmatpush1.msra.mxu0 0.0
        %368 = vmatprep.subr.mxu0 0.0
        %369 = vmatpush1.msra.mxu0 0.0
        %370 = vmatprep.subr.mxu0 0.0
        %371 = vmatpush1.msra.mxu0 %v325
        %372 = vmatprep.subr.mxu0 0.0
        %373 = vmatpush1.msra.mxu0 %v324
        %374 = vmatprep.subr.mxu0 0.0
        %375 = vmatpush1.msra.mxu0 %v323
        %376 = vmatprep.subr.mxu0 0.0
        %377 = vmatpush1.msra.mxu0 %v322
        %378 = vmatprep.subr.mxu0 0.0
        %379 = vmatpush1.msra.mxu0 %v321
        %380 = vmatprep.subr.mxu0 0.0
        %381 = vmatpush1.msra.mxu0 %v320
        %382 = vmatprep.subr.mxu0 0.0
        %383 = vmatpush1.msra.mxu0 %v319
        %384 = vmatprep.subr.mxu0 0.0
        %385 = vmatpush1.msra.mxu0 %v318
        %386 = vmatprep.subr.mxu0 0.0
        %387 = vmatpush2.msra.mxu0 0.0
        %388 = vmatprep.subr.mxu0 0.0
        %389 = vmatpush2.msra.mxu0 0.0
        %390 = vmatprep.subr.mxu0 0.0
        %391 = vmatpush2.msra.mxu0 0.0
        %392 = vmatprep.subr.mxu0 0.0
        %393 = vmatpush2.msra.mxu0 0.0
        %394 = vmatprep.subr.mxu0 0.0
        %395 = vmatpush2.msra.mxu0 0.0
        %396 = vmatprep.subr.mxu0 0.0
        %397 = vmatpush2.msra.mxu0 0.0
        %398 = vmatprep.subr.mxu0 0.0
        %399 = vmatpush2.msra.mxu0 0.0
        %400 = vmatprep.subr.mxu0 0.0
        %401 = vmatpush2.msra.mxu0 0.0
        %402 = vmatprep.subr.mxu0 0.0
        %403 = vmatpush2.msra.mxu0 0.0
        %404 = vmatprep.subr.mxu0 0.0
        %405 = vmatpush2.msra.mxu0 0.0
        %406 = vmatprep.subr.mxu0 0.0
        %407 = vmatpush2.msra.mxu0 0.0
        %408 = vmatprep.subr.mxu0 0.0
        %409 = vmatpush2.msra.mxu0 0.0
        %410 = vmatprep.subr.mxu0 0.0
        %411 = vmatpush2.msra.mxu0 0.0
        %412 = vmatprep.subr.mxu0 0.0
        %413 = vmatpush2.msra.mxu0 0.0
        %414 = vmatprep.subr.mxu0 0.0
        %415 = vmatpush2.msra.mxu0 0.0
        %416 = vmatprep.subr.mxu0 0.0
        %417 = vmatpush2.msra.mxu0 0.0
        %418 = vmatprep.mubr.f32.mxu0 0.0
        %419 = vmatmul.mubr.f32.gmra.mxu0 %v352
        %v420 = vpop.f32.mrf.mxu0
        %v421 = vadd.f32 %v349, %v420
        %v422 = vpop.f32.mrf.mxu0
        %423 = vdwg.mxu0
        %v424 = vmul.f32 %v421, 0.5
        %v425 = vmul.f32 %v421, 0.70710677
        %v426 = verf.f32.pop %v425
        %v427 = vadd.f32 %v426, 1.0
        %v428 = vmul.f32 %v424, %v427
        %429 = vmatprep.subr.mxu0 0.0
        %430 = vmatpush1.msra.mxu0 %v344
        %431 = vmatprep.subr.mxu0 0.0
        %432 = vmatpush1.msra.mxu0 %v343
        %433 = vmatprep.subr.mxu0 0.0
        %434 = vmatpush1.msra.mxu0 %v342
        %435 = vmatprep.subr.mxu0 0.0
        %436 = vmatpush1.msra.mxu0 %v341
        %437 = vmatprep.subr.mxu0 0.0
        %438 = vmatpush1.msra.mxu0 %v340
        %439 = vmatprep.subr.mxu0 0.0
        %440 = vmatpush1.msra.mxu0 %v339
        %441 = vmatprep.subr.mxu0 0.0
        %442 = vmatpush1.msra.mxu0 %v338
        %443 = vmatprep.subr.mxu0 0.0
        %444 = vmatpush1.msra.mxu0 %v337
        %445 = vmatprep.subr.mxu0 0.0
        %446 = vmatpush1.msra.mxu0 %v336
        %447 = vmatprep.subr.mxu0 0.0
        %448 = vmatpush1.msra.mxu0 %v335
        %449 = vmatprep.subr.mxu0 0.0
        %450 = vmatpush1.msra.mxu0 %v334
        %451 = vmatprep.subr.mxu0 0.0
        %452 = vmatpush1.msra.mxu0 %v333
        %453 = vmatprep.subr.mxu0 0.0
        %454 = vmatpush1.msra.mxu0 %v332
        %455 = vmatprep.subr.mxu0 0.0
        %456 = vmatpush1.msra.mxu0 %v331
        %457 = vmatprep.subr.mxu0 0.0
        %458 = vmatpush1.msra.mxu0 %v330
        %459 = vmatprep.subr.mxu0 0.0
        %460 = vmatpush1.msra.mxu0 %v329
        %461 = vmatprep.subr.mxu0 0.0
        %462 = vmatpush2.msra.mxu0 0.0
        %463 = vmatprep.subr.mxu0 0.0
        %464 = vmatpush2.msra.mxu0 0.0
        %465 = vmatprep.subr.mxu0 0.0
        %466 = vmatpush2.msra.mxu0 0.0
        %467 = vmatprep.subr.mxu0 0.0
        %468 = vmatpush2.msra.mxu0 0.0
        %469 = vmatprep.subr.mxu0 0.0
        %470 = vmatpush2.msra.mxu0 0.0
        %471 = vmatprep.subr.mxu0 0.0
        %472 = vmatpush2.msra.mxu0 0.0
        %473 = vmatprep.subr.mxu0 0.0
        %474 = vmatpush2.msra.mxu0 0.0
        %475 = vmatprep.subr.mxu0 0.0
        %476 = vmatpush2.msra.mxu0 0.0
        %477 = vmatprep.subr.mxu0 0.0
        %478 = vmatpush2.msra.mxu0 0.0
        %479 = vmatprep.subr.mxu0 0.0
        %480 = vmatpush2.msra.mxu0 0.0
        %481 = vmatprep.subr.mxu0 0.0
        %482 = vmatpush2.msra.mxu0 0.0
        %483 = vmatprep.subr.mxu0 0.0
        %484 = vmatpush2.msra.mxu0 0.0
        %485 = vmatprep.subr.mxu0 0.0
        %486 = vmatpush2.msra.mxu0 0.0
        %487 = vmatprep.subr.mxu0 0.0
        %488 = vmatpush2.msra.mxu0 0.0
        %489 = vmatprep.subr.mxu0 0.0
        %490 = vmatpush2.msra.mxu0 0.0
        %491 = vmatprep.subr.mxu0 0.0
        %492 = vmatpush2.msra.mxu0 0.0
        %493 = vmatprep.mubr.f32.mxu0 0.0
        %494 = vmatmul.mubr.f32.gmra.mxu0 %v428
        %v495 = vpop.f32.mrf.mxu0
        %v496 = vadd.f32 0.0, %v495
        %v497 = vpop.f32.mrf.mxu0
        %498 = vdwg.mxu0
        %v499 = vadd.f32 %v312, %v496
      $region53: #{block_forward.3} parent=47 // loop_footer
        %s311 = sadd.s32 1, %s307
      $region54: #{block_forward.3} parent=47 // loop_footer_branch
        %306 = sbr.rel target = $region50
      $region55: #{block_forward.3} parent=47 // loop_exit
        _
      %v500 = vadd.f32 %v274, %v312
      %v501 = vld [vmem:[%s6] sm:$0x1]
      %v503 = vlaneseq
      %v504 = vshrl.u32 %v503, 7
      %v505 = vsub.s32 0, %v504
      %v506 = vrot.slane %v501, %v505
      %v508 = vadd.f32 %v500, %v506
      %509 = vst.msk [vmem:[%s273] sm:$0xff] %vm277, %v508
      %p510 = scmp.lt.s32.totalorder %s18, 2
      %s511 = scalar_select %p510, %s18, 2
      %s512 = smul.addr %s511, 8
      %s513 = scalar_lea.vmem %s7, %s512
      // Predicated region
      $region56: #{block_forward.3} parent=47 // pred_check
        %p514 = pneg %p188
      $region57: #{block_forward.3} parent=47 // pred_check_branch
        %516 = sbr.rel (%p514) target = $region59
      $region58: #{block_forward.3} parent=47 // pred_region
        _
      $region59: #{block_forward.3} parent=47 // pred_fallthru
        _
    $region48: #{block_forward.3} parent=5 // pred_fallthru
      _
    %p517 = scmp.le.s32.totalorder 2, %s13
    // Predicated region
    $region60: #{block_forward.3} parent=5 // pred_check
      %p518 = pneg %p517
    $region61: #{block_forward.3} parent=5 // pred_check_branch
      %520 = sbr.rel (%p518) target = $region63
    $region62: #{block_forward.3} parent=5 // pred_region
      %s521 = ssub.s32 %s13, 2
      // Predicated region
      $region64: #{block_forward.3} parent=62 // pred_check
        %p522 = pneg %p194
      $region65: #{block_forward.3} parent=62 // pred_check_branch
        %524 = sbr.rel (%p522) target = $region67
      $region66: #{block_forward.3} parent=62 // pred_region
        %p525 = scmp.lt.s32.totalorder %s19, 2
        %s526 = scalar_select %p525, %s19, 2
        %s527 = smul.addr %s526, 8
        %s528 = scalar_lea.vmem %s7, %s527
      $region67: #{block_forward.3} parent=62 // pred_fallthru
        _
    $region63: #{block_forward.3} parent=5 // pred_fallthru
      _
  $region6: #{block_forward.3} parent=0 // loop_footer
    %s17 = sadd.s32 1, %s13
  $region7: #{block_forward.3} parent=0 // loop_footer_branch
    %12 = sbr.rel target = $region3
  $region8: #{block_forward.3} parent=0 // loop_exit
    _

// kernel: block_forward.2
$region0: #{block_forward.2}
  #allocation0 [shape = 'u32[]', space=smem, size = 0x4, offset = 0x4, fixed_abs, tag = 'smem constant byte address 0x4 - core index']
  #allocation1 [shape = 'u32[144,128]{1,0:T(1,128)}', space=vmem, size = 0x12000, scoped, tag = 'internal scratch']
  %s0 = inlined_call_operand.vmem [shape: f32[2,9,64], index: 0, kind: input, shape index: {}]
  %s1 = inlined_call_operand.vmem [shape: f32[1,64], index: 1, kind: input, shape index: {}]
  %s2 = inlined_call_operand.vmem [shape: f32[1,64], index: 2, kind: input, shape index: {}]
  %s3 = inlined_call_operand.hbm [shape: f32[64,192], index: 3, kind: input, shape index: {}]
  %s4 = inlined_call_operand.vmem [shape: f32[1,192], index: 4, kind: input, shape index: {}]
  %s5 = inlined_call_operand.vmem [shape: f32[64,64], index: 5, kind: input, shape index: {}]
  %s6 = inlined_call_operand.vmem [shape: f32[1,64], index: 6, kind: input, shape index: {}]
  %s7 = inlined_call_operand.vmem [shape: f32[2,9,64], index: 7, kind: output, shape index: {}]
  %s8 = sld [smem:[#allocation0]]
  $region65: #{block_forward.2} parent=0
    _
  %s10 = ssub.s32 1, %s8
  %s11 = scalar_select 0, %s10, %s8
  $region1: #{block_forward.2} parent=0
    #allocation2 [shape = 'u8[65536]{0}', space=vmem, size = 0x10000, scoped, tag = 'input window, operand 3, single buffered']
    #allocation3 [shape = 's32[2]{0}', space=sflag, size = 0x8, scoped, tag = 'scoped memory for block_forward.2']
    %12 = vsyncpa [#allocation3], 0
    loop: start=0, step=1, limit=4
    $region2: #{block_forward.2} parent=1 // loop_pre_header
      _
    $region3: #{block_forward.2} parent=1 // loop_header
      %s14 = sphi 0, %s18
      %p15 = scmp.ge.s32.totalorder %s14, 4
      %s24 = sphi 0, %s26
      %s27 = sphi 0, %s24
      %s28 = sphi 0, %s27
      %s44 = sphi 0, %s28
      %s48 = sphi 0, %s48
      %s50 = sphi 0, %s48
      %s51 = sphi 0, %s50
      %s65 = sphi 0, %s51
      %s69 = sphi 0, %s69
      %s71 = sphi 0, %s69
      %s72 = sphi 0, %s71
      %s86 = sphi 0, %s72
      %s90 = sphi 0, %s90
      %s92 = sphi 0, %s90
      %s93 = sphi 0, %s92
      %s107 = sphi 0, %s93
      %s111 = sphi 0, %s111
      %s113 = sphi 0, %s111
      %s114 = sphi 0, %s113
      %s128 = sphi 0, %s114
      %s132 = sphi 0, %s132
      %s134 = sphi 0, %s132
      %s135 = sphi 0, %s134
      %s149 = sphi 0, %s135
      %s153 = sphi 0, %s153
      %s155 = sphi 0, %s153
      %s156 = sphi 0, %s155
      %s170 = sphi 0, %s156
      %s176 = sphi 0, %s178
      %s179 = sphi 0, %s176
      %s180 = sphi 0, %s179
      %s196 = sphi 0, %s180
    $region4: #{block_forward.2} parent=1 // loop_header_branch
      %17 = sbr.rel (%p15) target = $region8
    $region5: #{block_forward.2} parent=1 // loop_body
      %s19 = ssub.s32 %s14, 1
      %s20 = ssub.s32 %s14, 2
      %s21 = sadd.s32 %s14, 1
      %s22 = ssub.s32 %s14, %s21
      %p23 = scmp.eq.s32.totalorder %s22, 0
      %s25 = sadd.s32 %s24, 1
      %s26 = scalar_select %p23, %s24, %s25
      %p29 = pneg %p23
      %p30 = scmp.eq.s32.totalorder %s14, 1
      %p31 = por %p29, %p30
      %p32 = scmp.ne.s32.totalorder %s24, %s27
      %p33 = scmp.eq.s32.totalorder %s14, 0
      %p34 = por %p32, %p33
      %p35 = scmp.ne.s32.totalorder %s24, %s27
      %p36 = scmp.eq.s32.totalorder %s19, 1
      %p37 = por %p35, %p36
      %p38 = scmp.ne.s32.totalorder %s27, %s28
      %p39 = scmp.eq.s32.totalorder %s19, 0
      %p40 = por %p38, %p39
      %p41 = scmp.ne.s32.totalorder %s27, %s28
      %p42 = scmp.eq.s32.totalorder %s20, 1
      %p43 = por %p41, %p42
      %p45 = scmp.ne.s32.totalorder %s28, %s44
      %p46 = scmp.eq.s32.totalorder %s20, 0
      %p47 = por %p45, %p46
      %s49 = sadd.s32 %s48, 1
      %p52 = scmp.eq.s32.totalorder %s14, 1
      %p53 = scmp.ne.s32.totalorder %s48, %s50
      %p54 = scmp.eq.s32.totalorder %s14, 0
      %p55 = por %p53, %p54
      %p56 = scmp.ne.s32.totalorder %s48, %s50
      %p57 = scmp.eq.s32.totalorder %s19, 1
      %p58 = por %p56, %p57
      %p59 = scmp.ne.s32.totalorder %s50, %s51
      %p60 = scmp.eq.s32.totalorder %s19, 0
      %p61 = por %p59, %p60
      %p62 = scmp.ne.s32.totalorder %s50, %s51
      %p63 = scmp.eq.s32.totalorder %s20, 1
      %p64 = por %p62, %p63
      %p66 = scmp.ne.s32.totalorder %s51, %s65
      %p67 = scmp.eq.s32.totalorder %s20, 0
      %p68 = por %p66, %p67
      %s70 = sadd.s32 %s69, 1
      %p73 = scmp.eq.s32.totalorder %s14, 1
      %p74 = scmp.ne.s32.totalorder %s69, %s71
      %p75 = scmp.eq.s32.totalorder %s14, 0
      %p76 = por %p74, %p75
      %p77 = scmp.ne.s32.totalorder %s69, %s71
      %p78 = scmp.eq.s32.totalorder %s19, 1
      %p79 = por %p77, %p78
      %p80 = scmp.ne.s32.totalorder %s71, %s72
      %p81 = scmp.eq.s32.totalorder %s19, 0
      %p82 = por %p80, %p81
      %p83 = scmp.ne.s32.totalorder %s71, %s72
      %p84 = scmp.eq.s32.totalorder %s20, 1
      %p85 = por %p83, %p84
      %p87 = scmp.ne.s32.totalorder %s72, %s86
      %p88 = scmp.eq.s32.totalorder %s20, 0
      %p89 = por %p87, %p88
      %s91 = sadd.s32 %s90, 1
      %p94 = scmp.eq.s32.totalorder %s14, 1
      %p95 = scmp.ne.s32.totalorder %s90, %s92
      %p96 = scmp.eq.s32.totalorder %s14, 0
      %p97 = por %p95, %p96
      %p98 = scmp.ne.s32.totalorder %s90, %s92
      %p99 = scmp.eq.s32.totalorder %s19, 1
      %p100 = por %p98, %p99
      %p101 = scmp.ne.s32.totalorder %s92, %s93
      %p102 = scmp.eq.s32.totalorder %s19, 0
      %p103 = por %p101, %p102
      %p104 = scmp.ne.s32.totalorder %s92, %s93
      %p105 = scmp.eq.s32.totalorder %s20, 1
      %p106 = por %p104, %p105
      %p108 = scmp.ne.s32.totalorder %s93, %s107
      %p109 = scmp.eq.s32.totalorder %s20, 0
      %p110 = por %p108, %p109
      %s112 = sadd.s32 %s111, 1
      %p115 = scmp.eq.s32.totalorder %s14, 1
      %p116 = scmp.ne.s32.totalorder %s111, %s113
      %p117 = scmp.eq.s32.totalorder %s14, 0
      %p118 = por %p116, %p117
      %p119 = scmp.ne.s32.totalorder %s111, %s113
      %p120 = scmp.eq.s32.totalorder %s19, 1
      %p121 = por %p119, %p120
      %p122 = scmp.ne.s32.totalorder %s113, %s114
      %p123 = scmp.eq.s32.totalorder %s19, 0
      %p124 = por %p122, %p123
      %p125 = scmp.ne.s32.totalorder %s113, %s114
      %p126 = scmp.eq.s32.totalorder %s20, 1
      %p127 = por %p125, %p126
      %p129 = scmp.ne.s32.totalorder %s114, %s128
      %p130 = scmp.eq.s32.totalorder %s20, 0
      %p131 = por %p129, %p130
      %s133 = sadd.s32 %s132, 1
      %p136 = scmp.eq.s32.totalorder %s14, 1
      %p137 = scmp.ne.s32.totalorder %s132, %s134
      %p138 = scmp.eq.s32.totalorder %s14, 0
      %p139 = por %p137, %p138
      %p140 = scmp.ne.s32.totalorder %s132, %s134
      %p141 = scmp.eq.s32.totalorder %s19, 1
      %p142 = por %p140, %p141
      %p143 = scmp.ne.s32.totalorder %s134, %s135
      %p144 = scmp.eq.s32.totalorder %s19, 0
      %p145 = por %p143, %p144
      %p146 = scmp.ne.s32.totalorder %s134, %s135
      %p147 = scmp.eq.s32.totalorder %s20, 1
      %p148 = por %p146, %p147
      %p150 = scmp.ne.s32.totalorder %s135, %s149
      %p151 = scmp.eq.s32.totalorder %s20, 0
      %p152 = por %p150, %p151
      %s154 = sadd.s32 %s153, 1
      %p157 = scmp.eq.s32.totalorder %s14, 1
      %p158 = scmp.ne.s32.totalorder %s153, %s155
      %p159 = scmp.eq.s32.totalorder %s14, 0
      %p160 = por %p158, %p159
      %p161 = scmp.ne.s32.totalorder %s153, %s155
      %p162 = scmp.eq.s32.totalorder %s19, 1
      %p163 = por %p161, %p162
      %p164 = scmp.ne.s32.totalorder %s155, %s156
      %p165 = scmp.eq.s32.totalorder %s19, 0
      %p166 = por %p164, %p165
      %p167 = scmp.ne.s32.totalorder %s155, %s156
      %p168 = scmp.eq.s32.totalorder %s20, 1
      %p169 = por %p167, %p168
      %p171 = scmp.ne.s32.totalorder %s156, %s170
      %p172 = scmp.eq.s32.totalorder %s20, 0
      %p173 = por %p171, %p172
      %s174 = ssub.s32 %s14, %s21
      %p175 = scmp.eq.s32.totalorder %s174, 0
      %s177 = sadd.s32 %s176, 1
      %s178 = scalar_select %p175, %s176, %s177
      %p181 = pneg %p175
      %p182 = scmp.eq.s32.totalorder %s14, 1
      %p183 = por %p181, %p182
      %p184 = scmp.ne.s32.totalorder %s176, %s179
      %p185 = scmp.eq.s32.totalorder %s14, 0
      %p186 = por %p184, %p185
      %p187 = scmp.ne.s32.totalorder %s176, %s179
      %p188 = scmp.eq.s32.totalorder %s19, 1
      %p189 = por %p187, %p188
      %p190 = scmp.ne.s32.totalorder %s179, %s180
      %p191 = scmp.eq.s32.totalorder %s19, 0
      %p192 = por %p190, %p191
      %p193 = scmp.ne.s32.totalorder %s179, %s180
      %p194 = scmp.eq.s32.totalorder %s20, 1
      %p195 = por %p193, %p194
      %p197 = scmp.ne.s32.totalorder %s180, %s196
      %p198 = scmp.eq.s32.totalorder %s20, 0
      %p199 = por %p197, %p198
      %p200 = scmp.le.s32.totalorder 1, %s14
      %p201 = scmp.lt.s32.totalorder %s14, 3
      %p202 = pnand %p200, %p201
      %p203 = pneg %p202
      // Predicated region
      $region9: #{block_forward.2} parent=5 // pred_check
        _
      $region10: #{block_forward.2} parent=5 // pred_check_branch
        %205 = sbr.rel (%p202) target = $region12
      $region11: #{block_forward.2} parent=5 // pred_region
        %s206 = ssub.s32 %s14, 1
        // Predicated region
        $region13: #{block_forward.2} parent=11 // pred_check
          %p207 = pneg %p61
        $region14: #{block_forward.2} parent=11 // pred_check_branch
          %209 = sbr.rel (%p207) target = $region16
        $region15: #{block_forward.2} parent=11 // pred_region
          _
        $region16: #{block_forward.2} parent=11 // pred_fallthru
          _
        // Predicated region
        $region17: #{block_forward.2} parent=11 // pred_check
          %p210 = pneg %p82
        $region18: #{block_forward.2} parent=11 // pred_check_branch
          %212 = sbr.rel (%p210) target = $region20
        $region19: #{block_forward.2} parent=11 // pred_region
          _
        $region20: #{block_forward.2} parent=11 // pred_fallthru
          _
        // Predicated region
        $region21: #{block_forward.2} parent=11 // pred_check
          %p213 = pneg %p103
        $region22: #{block_forward.2} parent=11 // pred_check_branch
          %215 = sbr.rel (%p213) target = $region24
        $region23: #{block_forward.2} parent=11 // pred_region
          %s217 = ssub.s32 2048, 2048
          %218 = vsyncadd [#allocation3], %s217
          %s219 = sshll.u32 [#allocation2], 4
          %s220 = int_to_ptr.vmem [resolvable:$true] %s219
          %225 = dma.hbm_to_vmem [thread:$0]  %s3, 2048, %s220, [#allocation3], 256, 256, 16
        $region24: #{block_forward.2} parent=11 // pred_fallthru
          _
        // Predicated region
        $region25: #{block_forward.2} parent=11 // pred_check
          %p226 = pneg %p124
        $region26: #{block_forward.2} parent=11 // pred_check_branch
          %228 = sbr.rel (%p226) target = $region28
        $region27: #{block_forward.2} parent=11 // pred_region
          _
        $region28: #{block_forward.2} parent=11 // pred_fallthru
          _
        // Predicated region
        $region29: #{block_forward.2} parent=11 // pred_check
          %p229 = pneg %p145
        $region30: #{block_forward.2} parent=11 // pred_check_branch
          %231 = sbr.rel (%p229) target = $region32
        $region31: #{block_forward.2} parent=11 // pred_region
          _
        $region32: #{block_forward.2} parent=11 // pred_fallthru
          _
        // Predicated region
        $region33: #{block_forward.2} parent=11 // pred_check
          %p232 = pneg %p166
        $region34: #{block_forward.2} parent=11 // pred_check_branch
          %234 = sbr.rel (%p232) target = $region36
        $region35: #{block_forward.2} parent=11 // pred_region
          _
        $region36: #{block_forward.2} parent=11 // pred_fallthru
          _
      $region12: #{block_forward.2} parent=5 // pred_fallthru
        _
      %p235 = scmp.lt.s32.totalorder %s14, 2
      // Predicated region
      $region37: #{block_forward.2} parent=5 // pred_check
        %p236 = pneg %p235
      $region38: #{block_forward.2} parent=5 // pred_check_branch
        %238 = sbr.rel (%p236) target = $region40
      $region39: #{block_forward.2} parent=5 // pred_region
        // Predicated region
        $region41: #{block_forward.2} parent=39 // pred_check
          %p239 = pneg %p34
        $region42: #{block_forward.2} parent=39 // pred_check_branch
          %241 = sbr.rel (%p239) target = $region44
        $region43: #{block_forward.2} parent=39 // pred_region
          %p242 = scmp.lt.s32.totalorder %s14, 1
          %s243 = scalar_select %p242, %s14, 1
          %s244 = smul.addr %s243, 2
          %s245 = smul.addr %s244, 8
          %s246 = scalar_lea.vmem %s0, %s245
        $region44: #{block_forward.2} parent=39 // pred_fallthru
          _
      $region40: #{block_forward.2} parent=5 // pred_fallthru
        _
      %p247 = scmp.le.s32.totalorder 1, %s14
      %p248 = scmp.lt.s32.totalorder %s14, 3
      %p249 = pnand %p247, %p248
      %p250 = pneg %p249
      // Predicated region
      $region45: #{block_forward.2} parent=5 // pred_check
        _
      $region46: #{block_forward.2} parent=5 // pred_check_branch
        %252 = sbr.rel (%p249) target = $region48
      $region47: #{block_forward.2} parent=5 // pred_region
        %s253 = ssub.s32 %s14, 1
        // Predicated region
        $region49: #{block_forward.2} parent=47 // pred_check
          %p254 = pneg %p103
        $region50: #{block_forward.2} parent=47 // pred_check_branch
          %256 = sbr.rel (%p254) target = $region52
        $region51: #{block_forward.2} parent=47 // pred_region
          %257 = dma.done [#allocation3], 2048
        $region52: #{block_forward.2} parent=47 // pred_fallthru
          _
        %p258 = scmp.lt.s32.totalorder %s19, 1
        %s259 = scalar_select %p258, %s19, 1
        %s260 = smul.addr %s259, 2
        %s261 = smul.addr %s260, 8
        %s262 = scalar_lea.vmem %s0, %s261
        %p263 = pneg %p40
        %p264 = pneg %p37
        %p265 = pneg %p61
        %p266 = pneg %p58
        %p267 = pneg %p82
        %p268 = pneg %p79
        %p269 = pneg %p103
        %p270 = pneg %p100
        %p271 = pneg %p124
        %p272 = pneg %p121
        %p273 = pneg %p145
        %p274 = pneg %p142
        %p275 = pneg %p166
        %p276 = pneg %p163
        %p277 = pneg %p192
        %p278 = pneg %p189
        %p279 = scmp.lt.s32.totalorder %s19, 1
        %s280 = scalar_select %p279, %s19, 1
        %s281 = smul.addr %s280, 2
        %s282 = smul.addr %s281, 8
        %s283 = scalar_lea.vmem %s7, %s282
        %p284 = scmp.lt.s32.totalorder %s19, 1
        %s285 = scalar_select %p284, %s19, 1
        %s286 = smul.addr %s285, 2
        %s287 = smul.addr %s286, 8
        %s288 = scalar_lea.vmem %s0, %s287
        %p289 = scmp.lt.s32.totalorder %s19, 1
        %s290 = scalar_select %p289, %s19, 1
        %s291 = smul.addr %s290, 2
        %s292 = smul.addr %s291, 8
        %s293 = scalar_lea.vmem %s7, %s292
        %v294 = vld [vmem:[%s288] sm:$0xff]
        %v295 = vld [vmem:[%s288 + $0x8] sm:$0x1]
        %v296 = vld [vmem:[%s1] sm:$0x1]
        %v297 = vld [vmem:[%s2] sm:$0x1]
        %vm298 = vcmask 523264
        %v299 = vsel %vm298, %v294, 0.0
        %300 = vadd.xlane.f32.xlu0 %v299
        %v301 = vpop.xlane.xlu0 %300
        %vm302 = vcmask 516096
        %v303 = vsel %vm302, %v295, 0.0
        %304 = vadd.xlane.f32.xlu0 %v303
        %v305 = vpop.xlane.xlu0 %304
        %v306 = vrcp.pop 64.0
        %v307 = vmul.f32 %v301, %v306
        %v308 = vmul.f32 %v305, %v306
        %v309 = vsub.f32 %v294, %v307
        %v310 = vsub.f32 %v295, %v308
        %v311 = vmul.f32 %v309, %v309
        %v312 = vmul.f32 %v310, %v310
        %v313 = vsel %vm298, %v311, 0.0
        %314 = vadd.xlane.f32.xlu0 %v313
        %v315 = vpop.xlane.xlu0 %314
        %v316 = vsel %vm302, %v312, 0.0
        %317 = vadd.xlane.f32.xlu0 %v316
        %v318 = vpop.xlane.xlu0 %317
        %v319 = vmul.f32 %v315, %v306
        %v320 = vmul.f32 %v318, %v306
        %v321 = vadd.f32 %v319, 1e-06
        %v322 = vadd.f32 %v320, 1e-06
        %v323 = vrsqrt.pop %v321
        %v324 = vrsqrt.pop %v322
        %v325 = vmul.f32 %v309, %v323
        %v326 = vmul.f32 %v310, %v324
        %v328 = vlaneseq
        %v329 = vshrl.u32 %v328, 7
        %v330 = vsub.s32 0, %v329
        %v331 = vrot.slane %v296, %v330
        %v333 = vmul.f32 %v325, %v331
        %v334 = vmul.f32 %v326, %v331
        %v336 = vlaneseq
        %v337 = vshrl.u32 %v336, 7
        %v338 = vsub.s32 0, %v337
        %v339 = vrot.slane %v297, %v338
        %v341 = vadd.f32 %v333, %v339
        %v342 = vadd.f32 %v334, %v339
        %v343 = vld [vmem:[#allocation2] sm:$0xff]
        %v344 = vld [vmem:[#allocation2 + $0x8] sm:$0xff]
        %v345 = vld [vmem:[#allocation2 + $0x10] sm:$0xff]
        %v346 = vld [vmem:[#allocation2 + $0x18] sm:$0xff]
        %v347 = vld [vmem:[#allocation2 + $0x20] sm:$0xff]
        %v348 = vld [vmem:[#allocation2 + $0x28] sm:$0xff]
        %v349 = vld [vmem:[#allocation2 + $0x30] sm:$0xff]
        %v350 = vld [vmem:[#allocation2 + $0x38] sm:$0xff]
        %v351 = vld [vmem:[#allocation2 + $0x40] sm:$0xff]
        %v352 = vld [vmem:[#allocation2 + $0x48] sm:$0xff]
        %v353 = vld [vmem:[#allocation2 + $0x50] sm:$0xff]
        %v354 = vld [vmem:[#allocation2 + $0x58] sm:$0xff]
        %v355 = vld [vmem:[#allocation2 + $0x60] sm:$0xff]
        %v356 = vld [vmem:[#allocation2 + $0x68] sm:$0xff]
        %v357 = vld [vmem:[#allocation2 + $0x70] sm:$0xff]
        %v358 = vld [vmem:[#allocation2 + $0x78] sm:$0xff]
        %v359 = vld [vmem:[%s4] sm:$0x3]
        %v361 = vlaneseq
        %v362 = vshrl.u32 %v361, 7
        %v363 = vsub.s32 0, %v362
        %v364 = vrot.slane %v359, %v363
        %v365 = vlaneseq
        %v366 = vshrl.u32 %v365, 7
        %v367 = vsub.s32 1, %v366
        %v368 = vrot.slane %v359, %v367
        %v372 = vsel %vm298, %v341, 0
        %v375 = vsel %vm298, %v342, 0
        %377 = vmatprep.subr.mxu0 0.0
        %378 = vmatpush1.msra.mxu0 0.0
        %379 = vmatprep.subr.mxu0 0.0
        %380 = vmatpush1.msra.mxu0 0.0
        %381 = vmatprep.subr.mxu0 0.0
        %382 = vmatpush1.msra.mxu0 0.0
        %383 = vmatprep.subr.mxu0 0.0
        %384 = vmatpush1.msra.mxu0 0.0
        %385 = vmatprep.subr.mxu0 0.0
        %386 = vmatpush1.msra.mxu0 0.0
        %387 = vmatprep.subr.mxu0 0.0
        %388 = vmatpush1.msra.mxu0 0.0
        %389 = vmatprep.subr.mxu0 0.0
        %390 = vmatpush1.msra.mxu0 0.0
        %391 = vmatprep.subr.mxu0 0.0
        %392 = vmatpush1.msra.mxu0 0.0
        %393 = vmatprep.subr.mxu0 %v358
        %394 = vmatpush1.msra.mxu0 %v357
        %395 = vmatprep.subr.mxu0 %v356
        %396 = vmatpush1.msra.mxu0 %v355
        %397 = vmatprep.subr.mxu0 %v354
        %398 = vmatpush1.msra.mxu0 %v353
        %399 = vmatprep.subr.mxu0 %v352
        %400 = vmatpush1.msra.mxu0 %v351
        %401 = vmatprep.subr.mxu0 %v350
        %402 = vmatpush1.msra.mxu0 %v349
        %403 = vmatprep.subr.mxu0 %v348
        %404 = vmatpush1.msra.mxu0 %v347
        %405 = vmatprep.subr.mxu0 %v346
        %406 = vmatpush1.msra.mxu0 %v345
        %407 = vmatprep.subr.mxu0 %v344
        %408 = vmatpush1.msra.mxu0 %v343
        %409 = vmatprep.subr.mxu0 0.0
        %410 = vmatpush2.msra.mxu0 0.0
        %411 = vmatprep.subr.mxu0 0.0
        %412 = vmatpush2.msra.mxu0 0.0
        %413 = vmatprep.subr.mxu0 0.0
        %414 = vmatpush2.msra.mxu0 0.0
        %415 = vmatprep.subr.mxu0 0.0
        %416 = vmatpush2.msra.mxu0 0.0
        %417 = vmatprep.subr.mxu0 0.0
        %418 = vmatpush2.msra.mxu0 0.0
        %419 = vmatprep.subr.mxu0 0.0
        %420 = vmatpush2.msra.mxu0 0.0
        %421 = vmatprep.subr.mxu0 0.0
        %422 = vmatpush2.msra.mxu0 0.0
        %423 = vmatprep.subr.mxu0 0.0
        %424 = vmatpush2.msra.mxu0 0.0
        %425 = vmatprep.subr.mxu0 0.0
        %426 = vmatpush2.msra.mxu0 0.0
        %427 = vmatprep.subr.mxu0 0.0
        %428 = vmatpush2.msra.mxu0 0.0
        %429 = vmatprep.subr.mxu0 0.0
        %430 = vmatpush2.msra.mxu0 0.0
        %431 = vmatprep.subr.mxu0 0.0
        %432 = vmatpush2.msra.mxu0 0.0
        %433 = vmatprep.subr.mxu0 0.0
        %434 = vmatpush2.msra.mxu0 0.0
        %435 = vmatprep.subr.mxu0 0.0
        %436 = vmatpush2.msra.mxu0 0.0
        %437 = vmatprep.subr.mxu0 0.0
        %438 = vmatpush2.msra.mxu0 0.0
        %439 = vmatprep.subr.mxu0 0.0
        %440 = vmatpush2.msra.mxu0 0.0
        %441 = vmatprep.mubr.f32.mxu0 0.0
        %442 = vmatmul.mubr.f32.gmra.mxu0 %v372
        %v443 = vpop.f32.mrf.mxu0
        %v444 = vadd.f32 %v364, %v443
        %v445 = vpop.f32.mrf.mxu0
        %v446 = vadd.f32 %v368, %v445
        %447 = vmatprep.mubr.f32.mxu0 0.0
        %448 = vmatmul.mubr.f32.gmra.mxu0 %v375
        %v449 = vpop.f32.mrf.mxu0
        %v450 = vadd.f32 %v364, %v449
        %v451 = vpop.f32.mrf.mxu0
        %v452 = vadd.f32 %v368, %v451
        %453 = vdwg.mxu0
        %456 = vrot.lane.b32.xlu0 %v444, 64
        %v457 = vpop.permute.xlu0 %456
        %458 = vrot.lane.b32.xlu0 %v450, 64
        %v459 = vpop.permute.xlu0 %458
        %vm460 = vcmask 130048
        %v461 = vsel %vm460, %v444, 0
        %v463 = vsel %vm460, %v450, 0
        %v465 = vsel %vm460, %v457, 0
        %v467 = vsel %vm460, %v459, 0
        %469 = vmatprep.subr.mxu0 0.0
        %470 = vmatpush1.xpose.msra.mxu0 0.0
        %471 = vmatprep.subr.mxu0 0.0
        %472 = vmatpush1.xpose.msra.mxu0 0.0
        %473 = vmatprep.subr.mxu0 0.0
        %474 = vmatpush1.xpose.msra.mxu0 0.0
        %475 = vmatprep.subr.mxu0 0.0
        %476 = vmatpush1.xpose.msra.mxu0 0.0
        %477 = vmatprep.subr.mxu0 0.0
        %478 = vmatpush1.xpose.msra.mxu0 0.0
        %479 = vmatprep.subr.mxu0 0.0
        %480 = vmatpush1.xpose.msra.mxu0 0.0
        %481 = vmatprep.subr.mxu0 0.0
        %482 = vmatpush1.xpose.msra.mxu0 0.0
        %483 = vmatprep.subr.mxu0 0.0
        %484 = vmatpush1.xpose.msra.mxu0 0.0
        %485 = vmatprep.subr.mxu0 0.0
        %486 = vmatpush1.xpose.msra.mxu0 0.0
        %487 = vmatprep.subr.mxu0 0.0
        %488 = vmatpush1.xpose.msra.mxu0 0.0
        %489 = vmatprep.subr.mxu0 0.0
        %490 = vmatpush1.xpose.msra.mxu0 0.0
        %491 = vmatprep.subr.mxu0 0.0
        %492 = vmatpush1.xpose.msra.mxu0 0.0
        %493 = vmatprep.subr.mxu0 0.0
        %494 = vmatpush1.xpose.msra.mxu0 0.0
        %495 = vmatprep.subr.mxu0 0.0
        %496 = vmatpush1.xpose.msra.mxu0 0.0
        %497 = vmatprep.subr.mxu0 0.0
        %498 = vmatpush1.xpose.msra.mxu0 %v467
        %499 = vmatprep.subr.mxu0 0.0
        %500 = vmatpush1.xpose.msra.mxu0 %v465
        %501 = vmatprep.subr.mxu0 0.0
        %502 = vmatpush2.xpose.msra.mxu0 0.0
        %503 = vmatprep.subr.mxu0 0.0
        %504 = vmatpush2.xpose.msra.mxu0 0.0
        %505 = vmatprep.subr.mxu0 0.0
        %506 = vmatpush2.xpose.msra.mxu0 0.0
        %507 = vmatprep.subr.mxu0 0.0
        %508 = vmatpush2.xpose.msra.mxu0 0.0
        %509 = vmatprep.subr.mxu0 0.0
        %510 = vmatpush2.xpose.msra.mxu0 0.0
        %511 = vmatprep.subr.mxu0 0.0
        %512 = vmatpush2.xpose.msra.mxu0 0.0
        %513 = vmatprep.subr.mxu0 0.0
        %514 = vmatpush2.xpose.msra.mxu0 0.0
        %515 = vmatprep.subr.mxu0 0.0
        %516 = vmatpush2.xpose.msra.mxu0 0.0
        %517 = vmatprep.subr.mxu0 0.0
        %518 = vmatpush2.xpose.msra.mxu0 0.0
        %519 = vmatprep.subr.mxu0 0.0
        %520 = vmatpush2.xpose.msra.mxu0 0.0
        %521 = vmatprep.subr.mxu0 0.0
        %522 = vmatpush2.xpose.msra.mxu0 0.0
        %523 = vmatprep.subr.mxu0 0.0
        %524 = vmatpush2.xpose.msra.mxu0 0.0
        %525 = vmatprep.subr.mxu0 0.0
        %526 = vmatpush2.xpose.msra.mxu0 0.0
        %527 = vmatprep.subr.mxu0 0.0
        %528 = vmatpush2.xpose.msra.mxu0 0.0
        %529 = vmatprep.subr.mxu0 0.0
        %530 = vmatpush2.xpose.msra.mxu0 0.0
        %531 = vmatprep.subr.mxu0 0.0
        %532 = vmatpush2.xpose.msra.mxu0 0.0
        %533 = vmatprep.mubr.f32.mxu0 0.0
        %534 = vmatmul.mubr.f32.gmra.mxu0 %v461
        %v535 = vpop.f32.mrf.mxu0
        %v536 = vadd.f32 0.0, %v535
        %v537 = vpop.f32.mrf.mxu0
        %538 = vmatprep.mubr.f32.mxu0 0.0
        %539 = vmatmul.mubr.f32.gmra.mxu0 %v463
        %v540 = vpop.f32.mrf.mxu0
        %v541 = vadd.f32 0.0, %v540
        %v542 = vpop.f32.mrf.mxu0
        %543 = vdwg.mxu0
        %v544 = vmul.f32 %v536, 0.25
        %v545 = vmul.f32 %v541, 0.25
        %vm546 = vcmask 72704
        %v547 = vsel %vm546, %v544, -inf
        %548 = vmax.xlane.f32.xlu0 %v547
        %v549 = vpop.xlane.xlu0 %548
        %vm550 = vcmask 65536
        %v551 = vsel %vm550, %v545, -inf
        %552 = vmax.xlane.f32.xlu0 %v551
        %v553 = vpop.xlane.xlu0 %552
        %v554 = vsub.f32 %v544, %v549
        %v555 = vsub.f32 %v545, %v553
        %v556 = vmul.f32 %v554, 1.442695
        %v557 = vpow.pop %v556
        %v558 = vmul.f32 %v555, 1.442695
        %v559 = vpow.pop %v558
        %v560 = vsel %vm546, %v557, 0.0
        %561 = vadd.xlane.f32.xlu0 %v560
        %v562 = vpop.xlane.xlu0 %561
        %v563 = vsel %vm550, %v559, 0.0
        %564 = vadd.xlane.f32.xlu0 %v563
        %v565 = vpop.xlane.xlu0 %564
        %v566 = vrcp.pop %v562
        %v567 = vmul.f32 %v557, %v566
        %v568 = vrcp.pop %v565
        %v569 = vmul.f32 %v559, %v568
        %v571 = vsel %vm546, %v567, 0
        %v574 = vsel %vm546, %v569, 0
        %vm576 = vcmask 1040384
        %v578 = vsel %vm576, %v452, 0
        %580 = vmatprep.subr.mxu0 0.0
        %581 = vmatpush1.msra.mxu0 0.0
        %582 = vmatprep.subr.mxu0 0.0
        %583 = vmatpush1.msra.mxu0 0.0
        %584 = vmatprep.subr.mxu0 0.0
        %585 = vmatpush1.msra.mxu0 0.0
        %586 = vmatprep.subr.mxu0 0.0
        %587 = vmatpush1.msra.mxu0 0.0
        %588 = vmatprep.subr.mxu0 0.0
        %589 = vmatpush1.msra.mxu0 0.0
        %590 = vmatprep.subr.mxu0 0.0
        %591 = vmatpush1.msra.mxu0 0.0
        %592 = vmatprep.subr.mxu0 0.0
        %593 = vmatpush1.msra.mxu0 0.0
        %594 = vmatprep.subr.mxu0 0.0
        %595 = vmatpush1.msra.mxu0 0.0
        %596 = vmatprep.subr.mxu0 0.0
        %597 = vmatpush1.msra.mxu0 0.0
        %598 = vmatprep.subr.mxu0 0.0
        %599 = vmatpush1.msra.mxu0 0.0
        %600 = vmatprep.subr.mxu0 0.0
        %601 = vmatpush1.msra.mxu0 0.0
        %602 = vmatprep.subr.mxu0 0.0
        %603 = vmatpush1.msra.mxu0 0.0
        %604 = vmatprep.subr.mxu0 0.0
        %605 = vmatpush1.msra.mxu0 0.0
        %606 = vmatprep.subr.mxu0 0.0
        %607 = vmatpush1.msra.mxu0 0.0
        %608 = vmatprep.subr.mxu0 0.0
        %609 = vmatpush1.msra.mxu0 %v578
        %610 = vmatprep.subr.mxu0 0.0
        %611 = vmatpush1.msra.mxu0 %v446
        %612 = vmatprep.subr.mxu0 0.0
        %613 = vmatpush2.msra.mxu0 0.0
        %614 = vmatprep.subr.mxu0 0.0
        %615 = vmatpush2.msra.mxu0 0.0
        %616 = vmatprep.subr.mxu0 0.0
        %617 = vmatpush2.msra.mxu0 0.0
        %618 = vmatprep.subr.mxu0 0.0
        %619 = vmatpush2.msra.mxu0 0.0
        %620 = vmatprep.subr.mxu0 0.0
        %621 = vmatpush2.msra.mxu0 0.0
        %622 = vmatprep.subr.mxu0 0.0
        %623 = vmatpush2.msra.mxu0 0.0
        %624 = vmatprep.subr.mxu0 0.0
        %625 = vmatpush2.msra.mxu0 0.0
        %626 = vmatprep.subr.mxu0 0.0
        %627 = vmatpush2.msra.mxu0 0.0
        %628 = vmatprep.subr.mxu0 0.0
        %629 = vmatpush2.msra.mxu0 0.0
        %630 = vmatprep.subr.mxu0 0.0
        %631 = vmatpush2.msra.mxu0 0.0
        %632 = vmatprep.subr.mxu0 0.0
        %633 = vmatpush2.msra.mxu0 0.0
        %634 = vmatprep.subr.mxu0 0.0
        %635 = vmatpush2.msra.mxu0 0.0
        %636 = vmatprep.subr.mxu0 0.0
        %637 = vmatpush2.msra.mxu0 0.0
        %638 = vmatprep.subr.mxu0 0.0
        %639 = vmatpush2.msra.mxu0 0.0
        %640 = vmatprep.subr.mxu0 0.0
        %641 = vmatpush2.msra.mxu0 0.0
        %642 = vmatprep.subr.mxu0 0.0
        %643 = vmatpush2.msra.mxu0 0.0
        %644 = vmatprep.mubr.f32.mxu0 0.0
        %645 = vmatmul.mubr.f32.gmra.mxu0 %v571
        %v646 = vpop.f32.mrf.mxu0
        %v647 = vadd.f32 0.0, %v646
        %v648 = vpop.f32.mrf.mxu0
        %649 = vmatprep.mubr.f32.mxu0 0.0
        %650 = vmatmul.mubr.f32.gmra.mxu0 %v574
        %v651 = vpop.f32.mrf.mxu0
        %v652 = vadd.f32 0.0, %v651
        %v653 = vpop.f32.mrf.mxu0
        %654 = vdwg.mxu0
        %655 = vrot.lane.b32.xlu0 %v444, 112
        %v656 = vpop.permute.xlu0 %655
        %657 = vrot.lane.b32.xlu0 %v450, 112
        %v658 = vpop.permute.xlu0 %657
        %659 = vrot.lane.b32.xlu0 %v444, 48
        %v660 = vpop.permute.xlu0 %659
        %661 = vrot.lane.b32.xlu0 %v450, 48
        %v662 = vpop.permute.xlu0 %661
        %v663 = vsel %vm460, %v656, 0
        %v665 = vsel %vm460, %v658, 0
        %v667 = vsel %vm460, %v660, 0
        %v669 = vsel %vm460, %v662, 0
        %671 = vmatprep.subr.mxu0 0.0
        %672 = vmatpush1.xpose.msra.mxu0 0.0
        %673 = vmatprep.subr.mxu0 0.0
        %674 = vmatpush1.xpose.msra.mxu0 0.0
        %675 = vmatprep.subr.mxu0 0.0
        %676 = vmatpush1.xpose.msra.mxu0 0.0
        %677 = vmatprep.subr.mxu0 0.0
        %678 = vmatpush1.xpose.msra.mxu0 0.0
        %679 = vmatprep.subr.mxu0 0.0
        %680 = vmatpush1.xpose.msra.mxu0 0.0
        %681 = vmatprep.subr.mxu0 0.0
        %682 = vmatpush1.xpose.msra.mxu0 0.0
        %683 = vmatprep.subr.mxu0 0.0
        %684 = vmatpush1.xpose.msra.mxu0 0.0
        %685 = vmatprep.subr.mxu0 0.0
        %686 = vmatpush1.xpose.msra.mxu0 0.0
        %687 = vmatprep.subr.mxu0 0.0
        %688 = vmatpush1.xpose.msra.mxu0 0.0
        %689 = vmatprep.subr.mxu0 0.0
        %690 = vmatpush1.xpose.msra.mxu0 0.0
        %691 = vmatprep.subr.mxu0 0.0
        %692 = vmatpush1.xpose.msra.mxu0 0.0
        %693 = vmatprep.subr.mxu0 0.0
        %694 = vmatpush1.xpose.msra.mxu0 0.0
        %695 = vmatprep.subr.mxu0 0.0
        %696 = vmatpush1.xpose.msra.mxu0 0.0
        %697 = vmatprep.subr.mxu0 0.0
        %698 = vmatpush1.xpose.msra.mxu0 0.0
        %699 = vmatprep.subr.mxu0 0.0
        %700 = vmatpush1.xpose.msra.mxu0 %v669
        %701 = vmatprep.subr.mxu0 0.0
        %702 = vmatpush1.xpose.msra.mxu0 %v667
        %703 = vmatprep.subr.mxu0 0.0
        %704 = vmatpush2.xpose.msra.mxu0 0.0
        %705 = vmatprep.subr.mxu0 0.0
        %706 = vmatpush2.xpose.msra.mxu0 0.0
        %707 = vmatprep.subr.mxu0 0.0
        %708 = vmatpush2.xpose.msra.mxu0 0.0
        %709 = vmatprep.subr.mxu0 0.0
        %710 = vmatpush2.xpose.msra.mxu0 0.0
        %711 = vmatprep.subr.mxu0 0.0
        %712 = vmatpush2.xpose.msra.mxu0 0.0
        %713 = vmatprep.subr.mxu0 0.0
        %714 = vmatpush2.xpose.msra.mxu0 0.0
        %715 = vmatprep.subr.mxu0 0.0
        %716 = vmatpush2.xpose.msra.mxu0 0.0
        %717 = vmatprep.subr.mxu0 0.0
        %718 = vmatpush2.xpose.msra.mxu0 0.0
        %719 = vmatprep.subr.mxu0 0.0
        %720 = vmatpush2.xpose.msra.mxu0 0.0
        %721 = vmatprep.subr.mxu0 0.0
        %722 = vmatpush2.xpose.msra.mxu0 0.0
        %723 = vmatprep.subr.mxu0 0.0
        %724 = vmatpush2.xpose.msra.mxu0 0.0
        %725 = vmatprep.subr.mxu0 0.0
        %726 = vmatpush2.xpose.msra.mxu0 0.0
        %727 = vmatprep.subr.mxu0 0.0
        %728 = vmatpush2.xpose.msra.mxu0 0.0
        %729 = vmatprep.subr.mxu0 0.0
        %730 = vmatpush2.xpose.msra.mxu0 0.0
        %731 = vmatprep.subr.mxu0 0.0
        %732 = vmatpush2.xpose.msra.mxu0 0.0
        %733 = vmatprep.subr.mxu0 0.0
        %734 = vmatpush2.xpose.msra.mxu0 0.0
        %735 = vmatprep.mubr.f32.mxu0 0.0
        %736 = vmatmul.mubr.f32.gmra.mxu0 %v663
        %v737 = vpop.f32.mrf.mxu0
        %v738 = vadd.f32 0.0, %v737
        %v739 = vpop.f32.mrf.mxu0
        %740 = vmatprep.mubr.f32.mxu0 0.0
        %741 = vmatmul.mubr.f32.gmra.mxu0 %v665
        %v742 = vpop.f32.mrf.mxu0
        %v743 = vadd.f32 0.0, %v742
        %v744 = vpop.f32.mrf.mxu0
        %745 = vdwg.mxu0
        %v746 = vmul.f32 %v738, 0.25
        %v747 = vmul.f32 %v743, 0.25
        %v748 = vsel %vm546, %v746, -inf
        %749 = vmax.xlane.f32.xlu0 %v748
        %v750 = vpop.xlane.xlu0 %749
        %v751 = vsel %vm550, %v747, -inf
        %752 = vmax.xlane.f32.xlu0 %v751
        %v753 = vpop.xlane.xlu0 %752
        %v754 = vsub.f32 %v746, %v750
        %v755 = vsub.f32 %v747, %v753
        %v756 = vmul.f32 %v754, 1.442695
        %v757 = vpow.pop %v756
        %v758 = vmul.f32 %v755, 1.442695
        %v759 = vpow.pop %v758
        %v760 = vsel %vm546, %v757, 0.0
        %761 = vadd.xlane.f32.xlu0 %v760
        %v762 = vpop.xlane.xlu0 %761
        %v763 = vsel %vm550, %v759, 0.0
        %764 = vadd.xlane.f32.xlu0 %v763
        %v765 = vpop.xlane.xlu0 %764
        %v766 = vrcp.pop %v762
        %v767 = vmul.f32 %v757, %v766
        %v768 = vrcp.pop %v765
        %v769 = vmul.f32 %v759, %v768
        %771 = vrot.lane.b32.xlu0 %v446, 112
        %v772 = vpop.permute.xlu0 %771
        %773 = vrot.lane.b32.xlu0 %v452, 112
        %v774 = vpop.permute.xlu0 %773
        %v777 = vsel %vm546, %v767, 0
        %v780 = vsel %vm546, %v769, 0
        %v782 = vsel %vm576, %v774, 0
        %784 = vmatprep.subr.mxu0 0.0
        %785 = vmatpush1.msra.mxu0 0.0
        %786 = vmatprep.subr.mxu0 0.0
        %787 = vmatpush1.msra.mxu0 0.0
        %788 = vmatprep.subr.mxu0 0.0
        %789 = vmatpush1.msra.mxu0 0.0
        %790 = vmatprep.subr.mxu0 0.0
        %791 = vmatpush1.msra.mxu0 0.0
        %792 = vmatprep.subr.mxu0 0.0
        %793 = vmatpush1.msra.mxu0 0.0
        %794 = vmatprep.subr.mxu0 0.0
        %795 = vmatpush1.msra.mxu0 0.0
        %796 = vmatprep.subr.mxu0 0.0
        %797 = vmatpush1.msra.mxu0 0.0
        %798 = vmatprep.subr.mxu0 0.0
        %799 = vmatpush1.msra.mxu0 0.0
        %800 = vmatprep.subr.mxu0 0.0
        %801 = vmatpush1.msra.mxu0 0.0
        %802 = vmatprep.subr.mxu0 0.0
        %803 = vmatpush1.msra.mxu0 0.0
        %804 = vmatprep.subr.mxu0 0.0
        %805 = vmatpush1.msra.mxu0 0.0
        %806 = vmatprep.subr.mxu0 0.0
        %807 = vmatpush1.msra.mxu0 0.0
        %808 = vmatprep.subr.mxu0 0.0
        %809 = vmatpush1.msra.mxu0 0.0
        %810 = vmatprep.subr.mxu0 0.0
        %811 = vmatpush1.msra.mxu0 0.0
        %812 = vmatprep.subr.mxu0 0.0
        %813 = vmatpush1.msra.mxu0 %v782
        %814 = vmatprep.subr.mxu0 0.0
        %815 = vmatpush1.msra.mxu0 %v772
        %816 = vmatprep.subr.mxu0 0.0
        %817 = vmatpush2.msra.mxu0 0.0
        %818 = vmatprep.subr.mxu0 0.0
        %819 = vmatpush2.msra.mxu0 0.0
        %820 = vmatprep.subr.mxu0 0.0
        %821 = vmatpush2.msra.mxu0 0.0
        %822 = vmatprep.subr.mxu0 0.0
        %823 = vmatpush2.msra.mxu0 0.0
        %824 = vmatprep.subr.mxu0 0.0
        %825 = vmatpush2.msra.mxu0 0.0
        %826 = vmatprep.subr.mxu0 0.0
        %827 = vmatpush2.msra.mxu0 0.0
        %828 = vmatprep.subr.mxu0 0.0
        %829 = vmatpush2.msra.mxu0 0.0
        %830 = vmatprep.subr.mxu0 0.0
        %831 = vmatpush2.msra.mxu0 0.0
        %832 = vmatprep.subr.mxu0 0.0
        %833 = vmatpush2.msra.mxu0 0.0
        %834 = vmatprep.subr.mxu0 0.0
        %835 = vmatpush2.msra.mxu0 0.0
        %836 = vmatprep.subr.mxu0 0.0
        %837 = vmatpush2.msra.mxu0 0.0
        %838 = vmatprep.subr.mxu0 0.0
        %839 = vmatpush2.msra.mxu0 0.0
        %840 = vmatprep.subr.mxu0 0.0
        %841 = vmatpush2.msra.mxu0 0.0
        %842 = vmatprep.subr.mxu0 0.0
        %843 = vmatpush2.msra.mxu0 0.0
        %844 = vmatprep.subr.mxu0 0.0
        %845 = vmatpush2.msra.mxu0 0.0
        %846 = vmatprep.subr.mxu0 0.0
        %847 = vmatpush2.msra.mxu0 0.0
        %848 = vmatprep.mubr.f32.mxu0 0.0
        %849 = vmatmul.mubr.f32.gmra.mxu0 %v777
        %v850 = vpop.f32.mrf.mxu0
        %v851 = vadd.f32 0.0, %v850
        %v852 = vpop.f32.mrf.mxu0
        %853 = vmatprep.mubr.f32.mxu0 0.0
        %854 = vmatmul.mubr.f32.gmra.mxu0 %v780
        %v855 = vpop.f32.mrf.mxu0
        %v856 = vadd.f32 0.0, %v855
        %v857 = vpop.f32.mrf.mxu0
        %858 = vdwg.mxu0
        %859 = vrot.lane.b32.xlu0 %v444, 96
        %v860 = vpop.permute.xlu0 %859
        %861 = vrot.lane.b32.xlu0 %v450, 96
        %v862 = vpop.permute.xlu0 %861
        %863 = vrot.lane.b32.xlu0 %v444, 32
        %v864 = vpop.permute.xlu0 %863
        %865 = vrot.lane.b32.xlu0 %v450, 32
        %v866 = vpop.permute.xlu0 %865
        %v867 = vsel %vm460, %v860, 0
        %v869 = vsel %vm460, %v862, 0
        %v871 = vsel %vm460, %v864, 0
        %v873 = vsel %vm460, %v866, 0
        %875 = vmatprep.subr.mxu0 0.0
        %876 = vmatpush1.xpose.msra.mxu0 0.0
        %877 = vmatprep.subr.mxu0 0.0
        %878 = vmatpush1.xpose.msra.mxu0 0.0
        %879 = vmatprep.subr.mxu0 0.0
        %880 = vmatpush1.xpose.msra.mxu0 0.0
        %881 = vmatprep.subr.mxu0 0.0
        %882 = vmatpush1.xpose.msra.mxu0 0.0
        %883 = vmatprep.subr.mxu0 0.0
        %884 = vmatpush1.xpose.msra.mxu0 0.0
        %885 = vmatprep.subr.mxu0 0.0
        %886 = vmatpush1.xpose.msra.mxu0 0.0
        %887 = vmatprep.subr.mxu0 0.0
        %888 = vmatpush1.xpose.msra.mxu0 0.0
        %889 = vmatprep.subr.mxu0 0.0
        %890 = vmatpush1.xpose.msra.mxu0 0.0
        %891 = vmatprep.subr.mxu0 0.0
        %892 = vmatpush1.xpose.msra.mxu0 0.0
        %893 = vmatprep.subr.mxu0 0.0
        %894 = vmatpush1.xpose.msra.mxu0 0.0
        %895 = vmatprep.subr.mxu0 0.0
        %896 = vmatpush1.xpose.msra.mxu0 0.0
        %897 = vmatprep.subr.mxu0 0.0
        %898 = vmatpush1.xpose.msra.mxu0 0.0
        %899 = vmatprep.subr.mxu0 0.0
        %900 = vmatpush1.xpose.msra.mxu0 0.0
        %901 = vmatprep.subr.mxu0 0.0
        %902 = vmatpush1.xpose.msra.mxu0 0.0
        %903 = vmatprep.subr.mxu0 0.0
        %904 = vmatpush1.xpose.msra.mxu0 %v873
        %905 = vmatprep.subr.mxu0 0.0
        %906 = vmatpush1.xpose.msra.mxu0 %v871
        %907 = vmatprep.subr.mxu0 0.0
        %908 = vmatpush2.xpose.msra.mxu0 0.0
        %909 = vmatprep.subr.mxu0 0.0
        %910 = vmatpush2.xpose.msra.mxu0 0.0
        %911 = vmatprep.subr.mxu0 0.0
        %912 = vmatpush2.xpose.msra.mxu0 0.0
        %913 = vmatprep.subr.mxu0 0.0
        %914 = vmatpush2.xpose.msra.mxu0 0.0
        %915 = vmatprep.subr.mxu0 0.0
        %916 = vmatpush2.xpose.msra.mxu0 0.0
        %917 = vmatprep.subr.mxu0 0.0
        %918 = vmatpush2.xpose.msra.mxu0 0.0
        %919 = vmatprep.subr.mxu0 0.0
        %920 = vmatpush2.xpose.msra.mxu0 0.0
        %921 = vmatprep.subr.mxu0 0.0
        %922 = vmatpush2.xpose.msra.mxu0 0.0
        %923 = vmatprep.subr.mxu0 0.0
        %924 = vmatpush2.xpose.msra.mxu0 0.0
        %925 = vmatprep.subr.mxu0 0.0
        %926 = vmatpush2.xpose.msra.mxu0 0.0
        %927 = vmatprep.subr.mxu0 0.0
        %928 = vmatpush2.xpose.msra.mxu0 0.0
        %929 = vmatprep.subr.mxu0 0.0
        %930 = vmatpush2.xpose.msra.mxu0 0.0
        %931 = vmatprep.subr.mxu0 0.0
        %932 = vmatpush2.xpose.msra.mxu0 0.0
        %933 = vmatprep.subr.mxu0 0.0
        %934 = vmatpush2.xpose.msra.mxu0 0.0
        %935 = vmatprep.subr.mxu0 0.0
        %936 = vmatpush2.xpose.msra.mxu0 0.0
        %937 = vmatprep.subr.mxu0 0.0
        %938 = vmatpush2.xpose.msra.mxu0 0.0
        %939 = vmatprep.mubr.f32.mxu0 0.0
        %940 = vmatmul.mubr.f32.gmra.mxu0 %v867
        %v941 = vpop.f32.mrf.mxu0
        %v942 = vadd.f32 0.0, %v941
        %v943 = vpop.f32.mrf.mxu0
        %944 = vmatprep.mubr.f32.mxu0 0.0
        %945 = vmatmul.mubr.f32.gmra.mxu0 %v869
        %v946 = vpop.f32.mrf.mxu0
        %v947 = vadd.f32 0.0, %v946
        %v948 = vpop.f32.mrf.mxu0
        %949 = vdwg.mxu0
        %v950 = vmul.f32 %v942, 0.25
        %v951 = vmul.f32 %v947, 0.25
        %v952 = vsel %vm546, %v950, -inf
        %953 = vmax.xlane.f32.xlu0 %v952
        %v954 = vpop.xlane.xlu0 %953
        %v955 = vsel %vm550, %v951, -inf
        %956 = vmax.xlane.f32.xlu0 %v955
        %v957 = vpop.xlane.xlu0 %956
        %v958 = vsub.f32 %v950, %v954
        %v959 = vsub.f32 %v951, %v957
        %v960 = vmul.f32 %v958, 1.442695
        %v961 = vpow.pop %v960
        %v962 = vmul.f32 %v959, 1.442695
        %v963 = vpow.pop %v962
        %v964 = vsel %vm546, %v961, 0.0
        %965 = vadd.xlane.f32.xlu0 %v964
        %v966 = vpop.xlane.xlu0 %965
        %v967 = vsel %vm550, %v963, 0.0
        %968 = vadd.xlane.f32.xlu0 %v967
        %v969 = vpop.xlane.xlu0 %968
        %v970 = vrcp.pop %v966
        %v971 = vmul.f32 %v961, %v970
        %v972 = vrcp.pop %v969
        %v973 = vmul.f32 %v963, %v972
        %974 = vrot.lane.b32.xlu0 %v446, 96
        %v975 = vpop.permute.xlu0 %974
        %976 = vrot.lane.b32.xlu0 %v452, 96
        %v977 = vpop.permute.xlu0 %976
        %v980 = vsel %vm546, %v971, 0
        %v983 = vsel %vm546, %v973, 0
        %v985 = vsel %vm576, %v977, 0
        %987 = vmatprep.subr.mxu0 0.0
        %988 = vmatpush1.msra.mxu0 0.0
        %989 = vmatprep.subr.mxu0 0.0
        %990 = vmatpush1.msra.mxu0 0.0
        %991 = vmatprep.subr.mxu0 0.0
        %992 = vmatpush1.msra.mxu0 0.0
        %993 = vmatprep.subr.mxu0 0.0
        %994 = vmatpush1.msra.mxu0 0.0
        %995 = vmatprep.subr.mxu0 0.0
        %996 = vmatpush1.msra.mxu0 0.0
        %997 = vmatprep.subr.mxu0 0.0
        %998 = vmatpush1.msra.mxu0 0.0
        %999 = vmatprep.subr.mxu0 0.0
        %1000 = vmatpush1.msra.mxu0 0.0
        %1001 = vmatprep.subr.mxu0 0.0
        %1002 = vmatpush1.msra.mxu0 0.0
        %1003 = vmatprep.subr.mxu0 0.0
        %1004 = vmatpush1.msra.mxu0 0.0
        %1005 = vmatprep.subr.mxu0 0.0
        %1006 = vmatpush1.msra.mxu0 0.0
        %1007 = vmatprep.subr.mxu0 0.0
        %1008 = vmatpush1.msra.mxu0 0.0
        %1009 = vmatprep.subr.mxu0 0.0
        %1010 = vmatpush1.msra.mxu0 0.0
        %1011 = vmatprep.subr.mxu0 0.0
        %1012 = vmatpush1.msra.mxu0 0.0
        %1013 = vmatprep.subr.mxu0 0.0
        %1014 = vmatpush1.msra.mxu0 0.0
        %1015 = vmatprep.subr.mxu0 0.0
        %1016 = vmatpush1.msra.mxu0 %v985
        %1017 = vmatprep.subr.mxu0 0.0
        %1018 = vmatpush1.msra.mxu0 %v975
        %1019 = vmatprep.subr.mxu0 0.0
        %1020 = vmatpush2.msra.mxu0 0.0
        %1021 = vmatprep.subr.mxu0 0.0
        %1022 = vmatpush2.msra.mxu0 0.0
        %1023 = vmatprep.subr.mxu0 0.0
        %1024 = vmatpush2.msra.mxu0 0.0
        %1025 = vmatprep.subr.mxu0 0.0
        %1026 = vmatpush2.msra.mxu0 0.0
        %1027 = vmatprep.subr.mxu0 0.0
        %1028 = vmatpush2.msra.mxu0 0.0
        %1029 = vmatprep.subr.mxu0 0.0
        %1030 = vmatpush2.msra.mxu0 0.0
        %1031 = vmatprep.subr.mxu0 0.0
        %1032 = vmatpush2.msra.mxu0 0.0
        %1033 = vmatprep.subr.mxu0 0.0
        %1034 = vmatpush2.msra.mxu0 0.0
        %1035 = vmatprep.subr.mxu0 0.0
        %1036 = vmatpush2.msra.mxu0 0.0
        %1037 = vmatprep.subr.mxu0 0.0
        %1038 = vmatpush2.msra.mxu0 0.0
        %1039 = vmatprep.subr.mxu0 0.0
        %1040 = vmatpush2.msra.mxu0 0.0
        %1041 = vmatprep.subr.mxu0 0.0
        %1042 = vmatpush2.msra.mxu0 0.0
        %1043 = vmatprep.subr.mxu0 0.0
        %1044 = vmatpush2.msra.mxu0 0.0
        %1045 = vmatprep.subr.mxu0 0.0
        %1046 = vmatpush2.msra.mxu0 0.0
        %1047 = vmatprep.subr.mxu0 0.0
        %1048 = vmatpush2.msra.mxu0 0.0
        %1049 = vmatprep.subr.mxu0 0.0
        %1050 = vmatpush2.msra.mxu0 0.0
        %1051 = vmatprep.mubr.f32.mxu0 0.0
        %1052 = vmatmul.mubr.f32.gmra.mxu0 %v980
        %v1053 = vpop.f32.mrf.mxu0
        %v1054 = vadd.f32 0.0, %v1053
        %v1055 = vpop.f32.mrf.mxu0
        %1056 = vmatprep.mubr.f32.mxu0 0.0
        %1057 = vmatmul.mubr.f32.gmra.mxu0 %v983
        %v1058 = vpop.f32.mrf.mxu0
        %v1059 = vadd.f32 0.0, %v1058
        %v1060 = vpop.f32.mrf.mxu0
        %1061 = vdwg.mxu0
        %1062 = vrot.lane.b32.xlu0 %v444, 80
        %v1063 = vpop.permute.xlu0 %1062
        %1064 = vrot.lane.b32.xlu0 %v450, 80
        %v1065 = vpop.permute.xlu0 %1064
        %1066 = vrot.lane.b32.xlu0 %v444, 16
        %v1067 = vpop.permute.xlu0 %1066
        %1068 = vrot.lane.b32.xlu0 %v450, 16
        %v1069 = vpop.permute.xlu0 %1068
        %v1070 = vsel %vm460, %v1063, 0
        %v1072 = vsel %vm460, %v1065, 0
        %v1074 = vsel %vm460, %v1067, 0
        %v1076 = vsel %vm460, %v1069, 0
        %1078 = vmatprep.subr.mxu0 0.0
        %1079 = vmatpush1.xpose.msra.mxu0 0.0
        %1080 = vmatprep.subr.mxu0 0.0
        %1081 = vmatpush1.xpose.msra.mxu0 0.0
        %1082 = vmatprep.subr.mxu0 0.0
        %1083 = vmatpush1.xpose.msra.mxu0 0.0
        %1084 = vmatprep.subr.mxu0 0.0
        %1085 = vmatpush1.xpose.msra.mxu0 0.0
        %1086 = vmatprep.subr.mxu0 0.0
        %1087 = vmatpush1.xpose.msra.mxu0 0.0
        %1088 = vmatprep.subr.mxu0 0.0
        %1089 = vmatpush1.xpose.msra.mxu0 0.0
        %1090 = vmatprep.subr.mxu0 0.0
        %1091 = vmatpush1.xpose.msra.mxu0 0.0
        %1092 = vmatprep.subr.mxu0 0.0
        %1093 = vmatpush1.xpose.msra.mxu0 0.0
        %1094 = vmatprep.subr.mxu0 0.0
        %1095 = vmatpush1.xpose.msra.mxu0 0.0
        %1096 = vmatprep.subr.mxu0 0.0
        %1097 = vmatpush1.xpose.msra.mxu0 0.0
        %1098 = vmatprep.subr.mxu0 0.0
        %1099 = vmatpush1.xpose.msra.mxu0 0.0
        %1100 = vmatprep.subr.mxu0 0.0
        %1101 = vmatpush1.xpose.msra.mxu0 0.0
        %1102 = vmatprep.subr.mxu0 0.0
        %1103 = vmatpush1.xpose.msra.mxu0 0.0
        %1104 = vmatprep.subr.mxu0 0.0
        %1105 = vmatpush1.xpose.msra.mxu0 0.0
        %1106 = vmatprep.subr.mxu0 0.0
        %1107 = vmatpush1.xpose.msra.mxu0 %v1076
        %1108 = vmatprep.subr.mxu0 0.0
        %1109 = vmatpush1.xpose.msra.mxu0 %v1074
        %1110 = vmatprep.subr.mxu0 0.0
        %1111 = vmatpush2.xpose.msra.mxu0 0.0
        %1112 = vmatprep.subr.mxu0 0.0
        %1113 = vmatpush2.xpose.msra.mxu0 0.0
        %1114 = vmatprep.subr.mxu0 0.0
        %1115 = vmatpush2.xpose.msra.mxu0 0.0
        %1116 = vmatprep.subr.mxu0 0.0
        %1117 = vmatpush2.xpose.msra.mxu0 0.0
        %1118 = vmatprep.subr.mxu0 0.0
        %1119 = vmatpush2.xpose.msra.mxu0 0.0
        %1120 = vmatprep.subr.mxu0 0.0
        %1121 = vmatpush2.xpose.msra.mxu0 0.0
        %1122 = vmatprep.subr.mxu0 0.0
        %1123 = vmatpush2.xpose.msra.mxu0 0.0
        %1124 = vmatprep.subr.mxu0 0.0
        %1125 = vmatpush2.xpose.msra.mxu0 0.0
        %1126 = vmatprep.subr.mxu0 0.0
        %1127 = vmatpush2.xpose.msra.mxu0 0.0
        %1128 = vmatprep.subr.mxu0 0.0
        %1129 = vmatpush2.xpose.msra.mxu0 0.0
        %1130 = vmatprep.subr.mxu0 0.0
        %1131 = vmatpush2.xpose.msra.mxu0 0.0
        %1132 = vmatprep.subr.mxu0 0.0
        %1133 = vmatpush2.xpose.msra.mxu0 0.0
        %1134 = vmatprep.subr.mxu0 0.0
        %1135 = vmatpush2.xpose.msra.mxu0 0.0
        %1136 = vmatprep.subr.mxu0 0.0
        %1137 = vmatpush2.xpose.msra.mxu0 0.0
        %1138 = vmatprep.subr.mxu0 0.0
        %1139 = vmatpush2.xpose.msra.mxu0 0.0
        %1140 = vmatprep.subr.mxu0 0.0
        %1141 = vmatpush2.xpose.msra.mxu0 0.0
        %1142 = vmatprep.mubr.f32.mxu0 0.0
        %1143 = vmatmul.mubr.f32.gmra.mxu0 %v1070
        %v1144 = vpop.f32.mrf.mxu0
        %v1145 = vadd.f32 0.0, %v1144
        %v1146 = vpop.f32.mrf.mxu0
        %1147 = vmatprep.mubr.f32.mxu0 0.0
        %1148 = vmatmul.mubr.f32.gmra.mxu0 %v1072
        %v1149 = vpop.f32.mrf.mxu0
        %v1150 = vadd.f32 0.0, %v1149
        %v1151 = vpop.f32.mrf.mxu0
        %1152 = vdwg.mxu0
        %v1153 = vmul.f32 %v1145, 0.25
        %v1154 = vmul.f32 %v1150, 0.25
        %v1155 = vsel %vm546, %v1153, -inf
        %1156 = vmax.xlane.f32.xlu0 %v1155
        %v1157 = vpop.xlane.xlu0 %1156
        %v1158 = vsel %vm550, %v1154, -inf
        %1159 = vmax.xlane.f32.xlu0 %v1158
        %v1160 = vpop.xlane.xlu0 %1159
        %v1161 = vsub.f32 %v1153, %v1157
        %v1162 = vsub.f32 %v1154, %v1160
        %v1163 = vmul.f32 %v1161, 1.442695
        %v1164 = vpow.pop %v1163
        %v1165 = vmul.f32 %v1162, 1.442695
        %v1166 = vpow.pop %v1165
        %v1167 = vsel %vm546, %v1164, 0.0
        %1168 = vadd.xlane.f32.xlu0 %v1167
        %v1169 = vpop.xlane.xlu0 %1168
        %v1170 = vsel %vm550, %v1166, 0.0
        %1171 = vadd.xlane.f32.xlu0 %v1170
        %v1172 = vpop.xlane.xlu0 %1171
        %v1173 = vrcp.pop %v1169
        %v1174 = vmul.f32 %v1164, %v1173
        %v1175 = vrcp.pop %v1172
        %v1176 = vmul.f32 %v1166, %v1175
        %1177 = vrot.lane.b32.xlu0 %v446, 80
        %v1178 = vpop.permute.xlu0 %1177
        %1179 = vrot.lane.b32.xlu0 %v452, 80
        %v1180 = vpop.permute.xlu0 %1179
        %v1183 = vsel %vm546, %v1174, 0
        %v1186 = vsel %vm546, %v1176, 0
        %v1188 = vsel %vm576, %v1180, 0
        %1190 = vmatprep.subr.mxu0 0.0
        %1191 = vmatpush1.msra.mxu0 0.0
        %1192 = vmatprep.subr.mxu0 0.0
        %1193 = vmatpush1.msra.mxu0 0.0
        %1194 = vmatprep.subr.mxu0 0.0
        %1195 = vmatpush1.msra.mxu0 0.0
        %1196 = vmatprep.subr.mxu0 0.0
        %1197 = vmatpush1.msra.mxu0 0.0
        %1198 = vmatprep.subr.mxu0 0.0
        %1199 = vmatpush1.msra.mxu0 0.0
        %1200 = vmatprep.subr.mxu0 0.0
        %1201 = vmatpush1.msra.mxu0 0.0
        %1202 = vmatprep.subr.mxu0 0.0
        %1203 = vmatpush1.msra.mxu0 0.0
        %1204 = vmatprep.subr.mxu0 0.0
        %1205 = vmatpush1.msra.mxu0 0.0
        %1206 = vmatprep.subr.mxu0 0.0
        %1207 = vmatpush1.msra.mxu0 0.0
        %1208 = vmatprep.subr.mxu0 0.0
        %1209 = vmatpush1.msra.mxu0 0.0
        %1210 = vmatprep.subr.mxu0 0.0
        %1211 = vmatpush1.msra.mxu0 0.0
        %1212 = vmatprep.subr.mxu0 0.0
        %1213 = vmatpush1.msra.mxu0 0.0
        %1214 = vmatprep.subr.mxu0 0.0
        %1215 = vmatpush1.msra.mxu0 0.0
        %1216 = vmatprep.subr.mxu0 0.0
        %1217 = vmatpush1.msra.mxu0 0.0
        %1218 = vmatprep.subr.mxu0 0.0
        %1219 = vmatpush1.msra.mxu0 %v1188
        %1220 = vmatprep.subr.mxu0 0.0
        %1221 = vmatpush1.msra.mxu0 %v1178
        %1222 = vmatprep.subr.mxu0 0.0
        %1223 = vmatpush2.msra.mxu0 0.0
        %1224 = vmatprep.subr.mxu0 0.0
        %1225 = vmatpush2.msra.mxu0 0.0
        %1226 = vmatprep.subr.mxu0 0.0
        %1227 = vmatpush2.msra.mxu0 0.0
        %1228 = vmatprep.subr.mxu0 0.0
        %1229 = vmatpush2.msra.mxu0 0.0
        %1230 = vmatprep.subr.mxu0 0.0
        %1231 = vmatpush2.msra.mxu0 0.0
        %1232 = vmatprep.subr.mxu0 0.0
        %1233 = vmatpush2.msra.mxu0 0.0
        %1234 = vmatprep.subr.mxu0 0.0
        %1235 = vmatpush2.msra.mxu0 0.0
        %1236 = vmatprep.subr.mxu0 0.0
        %1237 = vmatpush2.msra.mxu0 0.0
        %1238 = vmatprep.subr.mxu0 0.0
        %1239 = vmatpush2.msra.mxu0 0.0
        %1240 = vmatprep.subr.mxu0 0.0
        %1241 = vmatpush2.msra.mxu0 0.0
        %1242 = vmatprep.subr.mxu0 0.0
        %1243 = vmatpush2.msra.mxu0 0.0
        %1244 = vmatprep.subr.mxu0 0.0
        %1245 = vmatpush2.msra.mxu0 0.0
        %1246 = vmatprep.subr.mxu0 0.0
        %1247 = vmatpush2.msra.mxu0 0.0
        %1248 = vmatprep.subr.mxu0 0.0
        %1249 = vmatpush2.msra.mxu0 0.0
        %1250 = vmatprep.subr.mxu0 0.0
        %1251 = vmatpush2.msra.mxu0 0.0
        %1252 = vmatprep.subr.mxu0 0.0
        %1253 = vmatpush2.msra.mxu0 0.0
        %1254 = vmatprep.mubr.f32.mxu0 0.0
        %1255 = vmatmul.mubr.f32.gmra.mxu0 %v1183
        %v1256 = vpop.f32.mrf.mxu0
        %v1257 = vadd.f32 0.0, %v1256
        %v1258 = vpop.f32.mrf.mxu0
        %1259 = vmatprep.mubr.f32.mxu0 0.0
        %1260 = vmatmul.mubr.f32.gmra.mxu0 %v1186
        %v1261 = vpop.f32.mrf.mxu0
        %v1262 = vadd.f32 0.0, %v1261
        %v1263 = vpop.f32.mrf.mxu0
        %1264 = vdwg.mxu0
        %1267 = vrot.lane.b32.xlu0 %v851, 16
        %v1268 = vpop.permute.xlu0 %1267
        %1269 = vrot.lane.b32.xlu0 %v856, 16
        %v1270 = vpop.permute.xlu0 %1269
        %1275 = vrot.lane.b32.xlu0 %v1054, 32
        %v1276 = vpop.permute.xlu0 %1275
        %1277 = vrot.lane.b32.xlu0 %v1059, 32
        %v1278 = vpop.permute.xlu0 %1277
        %1283 = vrot.lane.b32.xlu0 %v1257, 48
        %v1284 = vpop.permute.xlu0 %1283
        %1285 = vrot.lane.b32.xlu0 %v1262, 48
        %v1286 = vpop.permute.xlu0 %1285
        %v1289 = vsel %vm460, %v647, %v1268
        %v1290 = vsel %vm460, %v652, %v1270
        %vm1291 = vcmask 261120
        %v1292 = vsel %vm1291, %v1289, %v1276
        %v1293 = vsel %vm1291, %v1290, %v1278
        %vm1294 = vcmask 392192
        %v1295 = vsel %vm1294, %v1292, %v1284
        %v1296 = vsel %vm1294, %v1293, %v1286
        %v1297 = vld [vmem:[%s5] sm:$0xff]
        %v1298 = vld [vmem:[%s5 + $0x8] sm:$0xff]
        %v1299 = vld [vmem:[%s5 + $0x10] sm:$0xff]
        %v1300 = vld [vmem:[%s5 + $0x18] sm:$0xff]
        %v1301 = vld [vmem:[%s5 + $0x20] sm:$0xff]
        %v1302 = vld [vmem:[%s5 + $0x28] sm:$0xff]
        %v1303 = vld [vmem:[%s5 + $0x30] sm:$0xff]
        %v1304 = vld [vmem:[%s5 + $0x38] sm:$0xff]
        %v1305 = vld [vmem:[%s6] sm:$0x1]
        %v1307 = vlaneseq
        %v1308 = vshrl.u32 %v1307, 7
        %v1309 = vsub.s32 0, %v1308
        %v1310 = vrot.slane %v1305, %v1309
        %v1313 = vsel %vm298, %v1295, 0
        %v1316 = vsel %vm298, %v1296, 0
        %1318 = vmatprep.subr.mxu0 0.0
        %1319 = vmatpush1.msra.mxu0 0.0
        %1320 = vmatprep.subr.mxu0 0.0
        %1321 = vmatpush1.msra.mxu0 0.0
        %1322 = vmatprep.subr.mxu0 0.0
        %1323 = vmatpush1.msra.mxu0 0.0
        %1324 = vmatprep.subr.mxu0 0.0
        %1325 = vmatpush1.msra.mxu0 0.0
        %1326 = vmatprep.subr.mxu0 0.0
        %1327 = vmatpush1.msra.mxu0 0.0
        %1328 = vmatprep.subr.mxu0 0.0
        %1329 = vmatpush1.msra.mxu0 0.0
        %1330 = vmatprep.subr.mxu0 0.0
        %1331 = vmatpush1.msra.mxu0 0.0
        %1332 = vmatprep.subr.mxu0 0.0
        %1333 = vmatpush1.msra.mxu0 0.0
        %1334 = vmatprep.subr.mxu0 0.0
        %1335 = vmatpush1.msra.mxu0 %v1304
        %1336 = vmatprep.subr.mxu0 0.0
        %1337 = vmatpush1.msra.mxu0 %v1303
        %1338 = vmatprep.subr.mxu0 0.0
        %1339 = vmatpush1.msra.mxu0 %v1302
        %1340 = vmatprep.subr.mxu0 0.0
        %1341 = vmatpush1.msra.mxu0 %v1301
        %1342 = vmatprep.subr.mxu0 0.0
        %1343 = vmatpush1.msra.mxu0 %v1300
        %1344 = vmatprep.subr.mxu0 0.0
        %1345 = vmatpush1.msra.mxu0 %v1299
        %1346 = vmatprep.subr.mxu0 0.0
        %1347 = vmatpush1.msra.mxu0 %v1298
        %1348 = vmatprep.subr.mxu0 0.0
        %1349 = vmatpush1.msra.mxu0 %v1297
        %1350 = vmatprep.subr.mxu0 0.0
        %1351 = vmatpush2.msra.mxu0 0.0
        %1352 = vmatprep.subr.mxu0 0.0
        %1353 = vmatpush2.msra.mxu0 0.0
        %1354 = vmatprep.subr.mxu0 0.0
        %1355 = vmatpush2.msra.mxu0 0.0
        %1356 = vmatprep.subr.mxu0 0.0
        %1357 = vmatpush2.msra.mxu0 0.0
        %1358 = vmatprep.subr.mxu0 0.0
        %1359 = vmatpush2.msra.mxu0 0.0
        %1360 = vmatprep.subr.mxu0 0.0
        %1361 = vmatpush2.msra.mxu0 0.0
        %1362 = vmatprep.subr.mxu0 0.0
        %1363 = vmatpush2.msra.mxu0 0.0
        %1364 = vmatprep.subr.mxu0 0.0
        %1365 = vmatpush2.msra.mxu0 0.0
        %1366 = vmatprep.subr.mxu0 0.0
        %1367 = vmatpush2.msra.mxu0 0.0
        %1368 = vmatprep.subr.mxu0 0.0
        %1369 = vmatpush2.msra.mxu0 0.0
        %1370 = vmatprep.subr.mxu0 0.0
        %1371 = vmatpush2.msra.mxu0 0.0
        %1372 = vmatprep.subr.mxu0 0.0
        %1373 = vmatpush2.msra.mxu0 0.0
        %1374 = vmatprep.subr.mxu0 0.0
        %1375 = vmatpush2.msra.mxu0 0.0
        %1376 = vmatprep.subr.mxu0 0.0
        %1377 = vmatpush2.msra.mxu0 0.0
        %1378 = vmatprep.subr.mxu0 0.0
        %1379 = vmatpush2.msra.mxu0 0.0
        %1380 = vmatprep.subr.mxu0 0.0
        %1381 = vmatpush2.msra.mxu0 0.0
        %1382 = vmatprep.mubr.f32.mxu0 0.0
        %1383 = vmatmul.mubr.f32.gmra.mxu0 %v1313
        %v1384 = vpop.f32.mrf.mxu0
        %v1385 = vadd.f32 %v1310, %v1384
        %v1386 = vpop.f32.mrf.mxu0
        %1387 = vmatprep.mubr.f32.mxu0 0.0
        %1388 = vmatmul.mubr.f32.gmra.mxu0 %v1316
        %v1389 = vpop.f32.mrf.mxu0
        %v1390 = vadd.f32 %v1310, %v1389
        %v1391 = vpop.f32.mrf.mxu0
        %1392 = vdwg.mxu0
        %v1393 = vadd.f32 %v294, %v1385
        %v1394 = vadd.f32 %v295, %v1390
        %1395 = vst.msk [vmem:[%s293] sm:$0xff] %vm298, %v1393
        %1396 = vst.msk [vmem:[%s293 + $0x8] sm:$0x1] %vm302, %v1394
        %p1397 = scmp.lt.s32.totalorder %s19, 1
        %s1398 = scalar_select %p1397, %s19, 1
        %s1399 = smul.addr %s1398, 2
        %s1400 = smul.addr %s1399, 8
        %s1401 = scalar_lea.vmem %s7, %s1400
        // Predicated region
        $region53: #{block_forward.2} parent=47 // pred_check
          %p1402 = pneg %p189
        $region54: #{block_forward.2} parent=47 // pred_check_branch
          %1404 = sbr.rel (%p1402) target = $region56
        $region55: #{block_forward.2} parent=47 // pred_region
          _
        $region56: #{block_forward.2} parent=47 // pred_fallthru
          _
      $region48: #{block_forward.2} parent=5 // pred_fallthru
        _
      %p1405 = scmp.le.s32.totalorder 2, %s14
      // Predicated region
      $region57: #{block_forward.2} parent=5 // pred_check
        %p1406 = pneg %p1405
      $region58: #{block_forward.2} parent=5 // pred_check_branch
        %1408 = sbr.rel (%p1406) target = $region60
      $region59: #{block_forward.2} parent=5 // pred_region
        %s1409 = ssub.s32 %s14, 2
        // Predicated region
        $region61: #{block_forward.2} parent=59 // pred_check
          %p1410 = pneg %p195
        $region62: #{block_forward.2} parent=59 // pred_check_branch
          %1412 = sbr.rel (%p1410) target = $region64
        $region63: #{block_forward.2} parent=59 // pred_region
          %p1413 = scmp.lt.s32.totalorder %s20, 1
          %s1414 = scalar_select %p1413, %s20, 1
          %s1415 = smul.addr %s1414, 2
          %s1416 = smul.addr %s1415, 8
          %s1417 = scalar_lea.vmem %s7, %s1416
        $region64: #{block_forward.2} parent=59 // pred_fallthru
          _
      $region60: #{block_forward.2} parent=5 // pred_fallthru
        _
    $region6: #{block_forward.2} parent=1 // loop_footer
      %s18 = sadd.s32 1, %s14
    $region7: #{block_forward.2} parent=1 // loop_footer_branch
      %13 = sbr.rel target = $region3
    $region8: #{block_forward.2} parent=1 // loop_exit
      _
    %1418 = vsyncpa [#allocation3], 1
    %s1419 = scalar_lea.sflag [#allocation3], 1
    %1420 = vsyncpa %s1419, 1

</llo_original>
